<compile_context>
chip_gen: v7x
topology: tpu7x:2x2x1
jax: 0.10.0
libtpu: 0.0.40
codegen_flags: <defaults>
</compile_context>

<pallas_src>
import numpy as np
import jax
import jax.numpy as jnp
from jax.experimental import pallas as pl
from jax.experimental.pallas import tpu as pltpu

EPS = 1e-5  # PyTorch InstanceNorm1d default eps (affine=False, no running stats)

# Feature-group boundaries from the module:
#   no: [0,3)  pt: [3,6)  remaining_pt: [6,11)  ttd_slack: [11,16)  rest: [16,F)
GROUPS = ((0, 3), (3, 6), (6, 11), (11, 16))
LAYER_DIMS = (48, 36, 36, 24, 24, 12)  # hidden widths of subsequent_module


def _round_up(x, m):
    return (x + m - 1) // m * m


def _cdiv(a, b):
    return -(-a // b)


# ----------------------------------------------------------------------------
# Kernel (feature-major: features on sublanes, batch on lanes)
# ----------------------------------------------------------------------------
def network_validated_kernel(x_ref, ind_ref, indm_ref, rest_ref, *refs):
    """refs = (w1, b1, ..., w7, b7, out_ref).
    x_ref : [F, TB] f32 input tile.
    ind   : [F, G] exact 0/1 group membership (broadcast group -> feature rows).
    indm  : [G, F] group membership with rows pre-scaled by 1/group_width.
    rest  : [F, 1] 1.0 on pass-through feature rows (>= ttd_slack boundary).
    w_i   : [out, in] (bf16 or f32, PyTorch layout);  b_i : [out, 1] f32."""
    out_ref = refs[-1]
    params = refs[:-1]

    x = x_ref[...].astype(jnp.float32)          # [F, TB]
    ind = ind_ref[...]                          # [F, G]
    indm = indm_ref[...]                        # [G, F]
    rest = rest_ref[...]                        # [F, 1]

    # Group-wise InstanceNorm1d (C=1): per-group mean / biased variance on the
    # MXU via the (1/width)-scaled indicator; broadcast back (sublane axis)
    # with the exact 0/1 indicator.
    mean = jnp.dot(indm, x, preferred_element_type=jnp.float32)         # [G, TB]
    mean_b = jnp.dot(ind, mean, preferred_element_type=jnp.float32)     # [F, TB]
    centered = x - mean_b                       # == x on pass-through rows
    var = jnp.dot(indm, centered * centered, preferred_element_type=jnp.float32)
    scale = jax.lax.rsqrt(var + EPS)                                    # [G, TB]
    scale_b = jnp.dot(ind, scale, preferred_element_type=jnp.float32) + rest
    h = centered * scale_b                      # pass-through rows: x * 1.0

    # subsequent_module: 6 x (Linear + Tanh) then a final Linear, feature-major:
    #   h_{l+1} = W_l[out,in] @ h_l[in,TB] + b_l[out,1]
    # MXU operands in the weights' dtype (bf16 fast path), f32 accumulation,
    # bias add + tanh in f32 on lane-dense vregs.
    n_layers = len(params) // 2
    for i in range(n_layers):
        w = params[2 * i][...]                  # [out, in]
        b = params[2 * i + 1][...]              # [out, 1] f32
        h = jnp.dot(w, h.astype(w.dtype), preferred_element_type=jnp.float32) + b
        if i < n_layers - 1:
            h = jnp.tanh(h)

    out_ref[...] = h.astype(out_ref.dtype)      # [out_dim, TB] lane-dense store


# ----------------------------------------------------------------------------
# Parameter / constant preparation (one-time, outside the per-call hot path)
# ----------------------------------------------------------------------------
def init_params(key, input_size, output_size):
    """PyTorch nn.Linear-style init: W, b ~ U(-1/sqrt(fan_in), 1/sqrt(fan_in)).
    Returns [(w[out,in], b[out]), ...] in PyTorch layout."""
    dims = [input_size, *LAYER_DIMS, output_size]
    params = []
    for i in range(len(dims) - 1):
        key, kw, kb = jax.random.split(key, 3)
        bound = 1.0 / (dims[i] ** 0.5)
        w = jax.random.uniform(kw, (dims[i + 1], dims[i]), jnp.float32, -bound, bound)
        b = jax.random.uniform(kb, (dims[i + 1],), jnp.float32, -bound, bound)
        params.append((w, b))
    return params


def prepare_state(params, input_size, *, use_bf16=True):
    """Pre-cast the weights (kept in PyTorch [out,in] layout for the
    feature-major matmuls) and build the normalization constants once."""
    mm_dtype = jnp.bfloat16 if use_bf16 else jnp.float32
    flat = []
    for w, b in params:
        flat.append(jnp.asarray(w, jnp.float32).astype(mm_dtype))   # [out, in]
        flat.append(jnp.asarray(b, jnp.float32).reshape(-1, 1))     # [out, 1]

    G = len(GROUPS)
    ind = np.zeros((input_size, G), np.float32)
    for g, (s, e) in enumerate(GROUPS):
        ind[s:e, g] = 1.0
    widths = np.array([[float(e - s)] for (s, e) in GROUPS], np.float32)  # [G, 1]
    indm = ind.T / widths                                            # [G, F]
    rest = (ind.sum(axis=1) == 0.0).astype(np.float32).reshape(input_size, 1)
    consts = (jnp.asarray(ind), jnp.asarray(indm), jnp.asarray(rest))
    return consts, tuple(flat)


# ----------------------------------------------------------------------------
# Tile selection: multiples of 256, >= 2 grid steps when possible (v7x megacore)
# ----------------------------------------------------------------------------
def _choose_tile(B, tb_max):
    Bp = _round_up(max(B, 1), 256)
    n_steps = _cdiv(Bp, tb_max)
    if Bp >= 2 * 256:
        n_steps = max(n_steps, 2)       # keep the "parallel" axis shardable on v7x
    tb = _round_up(_cdiv(Bp, n_steps), 256)
    Bp = _round_up(Bp, tb)
    return tb, Bp


# ----------------------------------------------------------------------------
# Forward wrapper
# ----------------------------------------------------------------------------
def network_validated_forward(x, state, *, tb_max=2048):
    """x: [B, 1, input_size] float32 (NCL, as in PyTorch). Returns [B, output_size]."""
    consts, flat = state
    B, C, F = x.shape
    assert C == 1, "module semantics (squeeze(1)) require a single channel"
    assert F >= GROUPS[-1][1], "input_size must cover the normalized groups"
    out_dim = flat[-1].shape[0]

    # Feature-major input: [F, B] (features on sublanes, batch on lanes).
    xT = x.reshape(B, F).T
    tb, Bp = _choose_tile(B, tb_max)
    if Bp != B:
        xT = jnp.pad(xT, ((0, 0), (0, Bp - B)))   # zero cols -> finite, discarded
    grid = (Bp // tb,)

    # Advisory cost estimate.
    n_layers = len(flat) // 2
    dims = [F] + [flat[2 * i].shape[0] for i in range(n_layers)]
    mm_flops = 2 * Bp * sum(dims[i] * dims[i + 1] for i in range(n_layers))
    norm_flops = 2 * Bp * 4 * F * len(GROUPS)     # four small indicator matmuls
    transcendentals = Bp * sum(dims[1:-1])        # tanh on hidden layers
    bytes_accessed = (Bp * (F + out_dim) * 4
                      + sum(int(np.prod(a.shape)) * a.dtype.itemsize
                            for a in (*consts, *flat)))

    def _resident(a):
        # Full-array block with a constant index_map: fetched once, VMEM-resident.
        return pl.BlockSpec(a.shape, lambda i: (0, 0))

    in_specs = ([pl.BlockSpec((F, tb), lambda i: (0, i))]
                + [_resident(a) for a in consts]
                + [_resident(a) for a in flat])

    out = pl.pallas_call(
        network_validated_kernel,
        grid=grid,
        out_shape=jax.ShapeDtypeStruct((out_dim, Bp), jnp.float32),
        in_specs=in_specs,
        out_specs=pl.BlockSpec((out_dim, tb), lambda i: (0, i)),
        compiler_params=pltpu.CompilerParams(
            dimension_semantics=("parallel",),      # megacore sharding on v7x
            vmem_limit_bytes=32 * 1024 * 1024),     # explicit, portable budget
        cost_estimate=pl.CostEstimate(
            flops=int(mm_flops + norm_flops),
            transcendentals=int(transcendentals),
            bytes_accessed=int(bytes_accessed)),
    )(xT, *consts, *flat)

    out = out[:, :B] if Bp != B else out
    return out.T                                   # [B, out_dim]


# ----------------------------------------------------------------------------
# Pure-JAX reference (mirrors the PyTorch forward exactly, f32)
# ----------------------------------------------------------------------------
def network_validated_reference(x, params):
    B, C, F = x.shape
    h = x.reshape(B, F).astype(jnp.float32)
    cols = []
    for (s, e) in GROUPS:
        g = h[:, s:e]
        m = g.mean(axis=1, keepdims=True)
        v = ((g - m) ** 2).mean(axis=1, keepdims=True)
        cols.append((g - m) * jax.lax.rsqrt(v + EPS))
    cols.append(h[:, GROUPS[-1][1]:])
    h = jnp.concatenate(cols, axis=1)
    for i, (w, b) in enumerate(params):
        h = h @ jnp.asarray(w, jnp.float32).T + jnp.asarray(b, jnp.float32)
        if i < len(params) - 1:
            h = jnp.tanh(h)
    return h


if __name__ == "__main__":
    input_size, output_size = 24, 4   # input_size > ttd_slack_size (16); rest width = 8
    B, C = 512, 1                     # 2 batch tiles of 256 -> exercises grid / megacore

    key = jax.random.PRNGKey(0)
    kx, kp = jax.random.split(key)
    x = jax.random.normal(kx, (B, C, input_size), dtype=jnp.float32)
    params = init_params(kp, input_size, output_size)

    y_ref = network_validated_reference(x, params)

    # f32 weight path: semantic check against the pure-JAX reference.
    # (TPU default-precision f32 matmuls round operands to bf16, hence 2e-3.)
    state_f32 = prepare_state(params, input_size, use_bf16=False)
    y32 = jax.block_until_ready(network_validated_forward(x, state_f32))
    assert y32.shape == (B, output_size)
    assert float(jnp.max(jnp.abs(y32 - y_ref))) < 2e-3

    # bf16 MXU-operand path (performance configuration): loose tolerance check.
    state_bf16 = prepare_state(params, input_size, use_bf16=True)
    y16 = jax.block_until_ready(network_validated_forward(x, state_bf16))
    assert y16.shape == (B, output_size)
    assert bool(jnp.all(jnp.isfinite(y16)))
    assert float(jnp.max(jnp.abs(y16 - y_ref))) < 1e-1

    print("KERNEL_OK")
</pallas_src>

<mosaic_0001>
module attributes {stable_mosaic.version = 11 : i64} {
  func.func @network_validated_kernel(%arg0: i32, %arg1: memref<24x256xf32, #tpu.memory_space<vmem>>, %arg2: memref<24x4xf32, #tpu.memory_space<vmem>>, %arg3: memref<4x24xf32, #tpu.memory_space<vmem>>, %arg4: memref<24x1xf32, #tpu.memory_space<vmem>>, %arg5: memref<48x24xf32, #tpu.memory_space<vmem>>, %arg6: memref<48x1xf32, #tpu.memory_space<vmem>>, %arg7: memref<36x48xf32, #tpu.memory_space<vmem>>, %arg8: memref<36x1xf32, #tpu.memory_space<vmem>>, %arg9: memref<36x36xf32, #tpu.memory_space<vmem>>, %arg10: memref<36x1xf32, #tpu.memory_space<vmem>>, %arg11: memref<24x36xf32, #tpu.memory_space<vmem>>, %arg12: memref<24x1xf32, #tpu.memory_space<vmem>>, %arg13: memref<24x24xf32, #tpu.memory_space<vmem>>, %arg14: memref<24x1xf32, #tpu.memory_space<vmem>>, %arg15: memref<12x24xf32, #tpu.memory_space<vmem>>, %arg16: memref<12x1xf32, #tpu.memory_space<vmem>>, %arg17: memref<4x12xf32, #tpu.memory_space<vmem>>, %arg18: memref<4x1xf32, #tpu.memory_space<vmem>>, %arg19: memref<4x256xf32, #tpu.memory_space<vmem>>) attributes {dimension_semantics = [#tpu.dimension_semantics<parallel>], iteration_bounds = array<i64: 2>, scalar_prefetch = 0 : i64, scratch_operands = 0 : i64, tpu.core_type = #tpu.core_type<tc>, window_params = [{transform_indices = @transform_0, window_bounds = array<i64: 24, 256>}, {pipeline_mode = #tpu.pipeline_mode<synchronous>, transform_indices = @transform_1, window_bounds = array<i64: 24, 4>}, {pipeline_mode = #tpu.pipeline_mode<synchronous>, transform_indices = @transform_2, window_bounds = array<i64: 4, 24>}, {pipeline_mode = #tpu.pipeline_mode<synchronous>, transform_indices = @transform_3, window_bounds = array<i64: 24, 1>}, {pipeline_mode = #tpu.pipeline_mode<synchronous>, transform_indices = @transform_4, window_bounds = array<i64: 48, 24>}, {pipeline_mode = #tpu.pipeline_mode<synchronous>, transform_indices = @transform_5, window_bounds = array<i64: 48, 1>}, {pipeline_mode = #tpu.pipeline_mode<synchronous>, transform_indices = @transform_6, window_bounds = array<i64: 36, 48>}, {pipeline_mode = #tpu.pipeline_mode<synchronous>, transform_indices = @transform_7, window_bounds = array<i64: 36, 1>}, {pipeline_mode = #tpu.pipeline_mode<synchronous>, transform_indices = @transform_8, window_bounds = array<i64: 36, 36>}, {pipeline_mode = #tpu.pipeline_mode<synchronous>, transform_indices = @transform_9, window_bounds = array<i64: 36, 1>}, {pipeline_mode = #tpu.pipeline_mode<synchronous>, transform_indices = @transform_10, window_bounds = array<i64: 24, 36>}, {pipeline_mode = #tpu.pipeline_mode<synchronous>, transform_indices = @transform_11, window_bounds = array<i64: 24, 1>}, {pipeline_mode = #tpu.pipeline_mode<synchronous>, transform_indices = @transform_12, window_bounds = array<i64: 24, 24>}, {pipeline_mode = #tpu.pipeline_mode<synchronous>, transform_indices = @transform_13, window_bounds = array<i64: 24, 1>}, {pipeline_mode = #tpu.pipeline_mode<synchronous>, transform_indices = @transform_14, window_bounds = array<i64: 12, 24>}, {pipeline_mode = #tpu.pipeline_mode<synchronous>, transform_indices = @transform_15, window_bounds = array<i64: 12, 1>}, {pipeline_mode = #tpu.pipeline_mode<synchronous>, transform_indices = @transform_16, window_bounds = array<i64: 4, 12>}, {pipeline_mode = #tpu.pipeline_mode<synchronous>, transform_indices = @transform_17, window_bounds = array<i64: 4, 1>}, {transform_indices = @transform_18, window_bounds = array<i64: 4, 256>}]} {
    %c0 = arith.constant 0 : index
    %c0_0 = arith.constant 0 : index
    %0 = vector.load %arg1[%c0, %c0_0] : memref<24x256xf32, #tpu.memory_space<vmem>>, vector<24x256xf32>
    %c0_1 = arith.constant 0 : index
    %c0_2 = arith.constant 0 : index
    %1 = vector.load %arg2[%c0_1, %c0_2] : memref<24x4xf32, #tpu.memory_space<vmem>>, vector<24x4xf32>
    %c0_3 = arith.constant 0 : index
    %c0_4 = arith.constant 0 : index
    %2 = vector.load %arg3[%c0_3, %c0_4] : memref<4x24xf32, #tpu.memory_space<vmem>>, vector<4x24xf32>
    %c0_5 = arith.constant 0 : index
    %c0_6 = arith.constant 0 : index
    %3 = vector.load %arg4[%c0_5, %c0_6] : memref<24x1xf32, #tpu.memory_space<vmem>>, vector<24x1xf32>
    %cst = arith.constant dense<0.000000e+00> : vector<4x256xf32>
    %4 = tpu.matmul %2, %0, %cst {dimension_numbers = #tpu.dot_dimension_numbers<[1], [0], [0], [1], [0, 0, 1, 1], [], []>} : vector<4x24xf32>, vector<24x256xf32>, vector<4x256xf32> -> vector<4x256xf32>
    %cst_7 = arith.constant dense<0.000000e+00> : vector<24x256xf32>
    %5 = tpu.matmul %1, %4, %cst_7 {dimension_numbers = #tpu.dot_dimension_numbers<[1], [0], [0], [1], [0, 0, 1, 1], [], []>} : vector<24x4xf32>, vector<4x256xf32>, vector<24x256xf32> -> vector<24x256xf32>
    %6 = arith.subf %0, %5 : vector<24x256xf32>
    %7 = arith.mulf %6, %6 : vector<24x256xf32>
    %cst_8 = arith.constant dense<0.000000e+00> : vector<4x256xf32>
    %8 = tpu.matmul %2, %7, %cst_8 {dimension_numbers = #tpu.dot_dimension_numbers<[1], [0], [0], [1], [0, 0, 1, 1], [], []>} : vector<4x24xf32>, vector<24x256xf32>, vector<4x256xf32> -> vector<4x256xf32>
    %cst_9 = arith.constant 9.99999974E-6 : f32
    %9 = vector.broadcast %cst_9 : f32 to vector<4x256xf32>
    %10 = arith.addf %8, %9 : vector<4x256xf32>
    %11 = math.rsqrt %10 : vector<4x256xf32>
    %cst_10 = arith.constant dense<0.000000e+00> : vector<24x256xf32>
    %12 = tpu.matmul %1, %11, %cst_10 {dimension_numbers = #tpu.dot_dimension_numbers<[1], [0], [0], [1], [0, 0, 1, 1], [], []>} : vector<24x4xf32>, vector<4x256xf32>, vector<24x256xf32> -> vector<24x256xf32>
    %13 = vector.broadcast %3 : vector<24x1xf32> to vector<24x256xf32>
    %14 = arith.addf %12, %13 : vector<24x256xf32>
    %15 = arith.mulf %6, %14 : vector<24x256xf32>
    %c0_11 = arith.constant 0 : index
    %c0_12 = arith.constant 0 : index
    %16 = vector.load %arg5[%c0_11, %c0_12] : memref<48x24xf32, #tpu.memory_space<vmem>>, vector<48x24xf32>
    %c0_13 = arith.constant 0 : index
    %c0_14 = arith.constant 0 : index
    %17 = vector.load %arg6[%c0_13, %c0_14] : memref<48x1xf32, #tpu.memory_space<vmem>>, vector<48x1xf32>
    %cst_15 = arith.constant dense<0.000000e+00> : vector<48x256xf32>
    %18 = tpu.matmul %16, %15, %cst_15 {dimension_numbers = #tpu.dot_dimension_numbers<[1], [0], [0], [1], [0, 0, 1, 1], [], []>} : vector<48x24xf32>, vector<24x256xf32>, vector<48x256xf32> -> vector<48x256xf32>
    %19 = vector.broadcast %17 : vector<48x1xf32> to vector<48x256xf32>
    %20 = arith.addf %18, %19 : vector<48x256xf32>
    %21 = math.tanh %20 : vector<48x256xf32>
    %c0_16 = arith.constant 0 : index
    %c0_17 = arith.constant 0 : index
    %22 = vector.load %arg7[%c0_16, %c0_17] : memref<36x48xf32, #tpu.memory_space<vmem>>, vector<36x48xf32>
    %c0_18 = arith.constant 0 : index
    %c0_19 = arith.constant 0 : index
    %23 = vector.load %arg8[%c0_18, %c0_19] : memref<36x1xf32, #tpu.memory_space<vmem>>, vector<36x1xf32>
    %cst_20 = arith.constant dense<0.000000e+00> : vector<36x256xf32>
    %24 = tpu.matmul %22, %21, %cst_20 {dimension_numbers = #tpu.dot_dimension_numbers<[1], [0], [0], [1], [0, 0, 1, 1], [], []>} : vector<36x48xf32>, vector<48x256xf32>, vector<36x256xf32> -> vector<36x256xf32>
    %25 = vector.broadcast %23 : vector<36x1xf32> to vector<36x256xf32>
    %26 = arith.addf %24, %25 : vector<36x256xf32>
    %27 = math.tanh %26 : vector<36x256xf32>
    %c0_21 = arith.constant 0 : index
    %c0_22 = arith.constant 0 : index
    %28 = vector.load %arg9[%c0_21, %c0_22] : memref<36x36xf32, #tpu.memory_space<vmem>>, vector<36x36xf32>
    %c0_23 = arith.constant 0 : index
    %c0_24 = arith.constant 0 : index
    %29 = vector.load %arg10[%c0_23, %c0_24] : memref<36x1xf32, #tpu.memory_space<vmem>>, vector<36x1xf32>
    %cst_25 = arith.constant dense<0.000000e+00> : vector<36x256xf32>
    %30 = tpu.matmul %28, %27, %cst_25 {dimension_numbers = #tpu.dot_dimension_numbers<[1], [0], [0], [1], [0, 0, 1, 1], [], []>} : vector<36x36xf32>, vector<36x256xf32>, vector<36x256xf32> -> vector<36x256xf32>
    %31 = vector.broadcast %29 : vector<36x1xf32> to vector<36x256xf32>
    %32 = arith.addf %30, %31 : vector<36x256xf32>
    %33 = math.tanh %32 : vector<36x256xf32>
    %c0_26 = arith.constant 0 : index
    %c0_27 = arith.constant 0 : index
    %34 = vector.load %arg11[%c0_26, %c0_27] : memref<24x36xf32, #tpu.memory_space<vmem>>, vector<24x36xf32>
    %c0_28 = arith.constant 0 : index
    %c0_29 = arith.constant 0 : index
    %35 = vector.load %arg12[%c0_28, %c0_29] : memref<24x1xf32, #tpu.memory_space<vmem>>, vector<24x1xf32>
    %cst_30 = arith.constant dense<0.000000e+00> : vector<24x256xf32>
    %36 = tpu.matmul %34, %33, %cst_30 {dimension_numbers = #tpu.dot_dimension_numbers<[1], [0], [0], [1], [0, 0, 1, 1], [], []>} : vector<24x36xf32>, vector<36x256xf32>, vector<24x256xf32> -> vector<24x256xf32>
    %37 = vector.broadcast %35 : vector<24x1xf32> to vector<24x256xf32>
    %38 = arith.addf %36, %37 : vector<24x256xf32>
    %39 = math.tanh %38 : vector<24x256xf32>
    %c0_31 = arith.constant 0 : index
    %c0_32 = arith.constant 0 : index
    %40 = vector.load %arg13[%c0_31, %c0_32] : memref<24x24xf32, #tpu.memory_space<vmem>>, vector<24x24xf32>
    %c0_33 = arith.constant 0 : index
    %c0_34 = arith.constant 0 : index
    %41 = vector.load %arg14[%c0_33, %c0_34] : memref<24x1xf32, #tpu.memory_space<vmem>>, vector<24x1xf32>
    %cst_35 = arith.constant dense<0.000000e+00> : vector<24x256xf32>
    %42 = tpu.matmul %40, %39, %cst_35 {dimension_numbers = #tpu.dot_dimension_numbers<[1], [0], [0], [1], [0, 0, 1, 1], [], []>} : vector<24x24xf32>, vector<24x256xf32>, vector<24x256xf32> -> vector<24x256xf32>
    %43 = vector.broadcast %41 : vector<24x1xf32> to vector<24x256xf32>
    %44 = arith.addf %42, %43 : vector<24x256xf32>
    %45 = math.tanh %44 : vector<24x256xf32>
    %c0_36 = arith.constant 0 : index
    %c0_37 = arith.constant 0 : index
    %46 = vector.load %arg15[%c0_36, %c0_37] : memref<12x24xf32, #tpu.memory_space<vmem>>, vector<12x24xf32>
    %c0_38 = arith.constant 0 : index
    %c0_39 = arith.constant 0 : index
    %47 = vector.load %arg16[%c0_38, %c0_39] : memref<12x1xf32, #tpu.memory_space<vmem>>, vector<12x1xf32>
    %cst_40 = arith.constant dense<0.000000e+00> : vector<12x256xf32>
    %48 = tpu.matmul %46, %45, %cst_40 {dimension_numbers = #tpu.dot_dimension_numbers<[1], [0], [0], [1], [0, 0, 1, 1], [], []>} : vector<12x24xf32>, vector<24x256xf32>, vector<12x256xf32> -> vector<12x256xf32>
    %49 = vector.broadcast %47 : vector<12x1xf32> to vector<12x256xf32>
    %50 = arith.addf %48, %49 : vector<12x256xf32>
    %51 = math.tanh %50 : vector<12x256xf32>
    %c0_41 = arith.constant 0 : index
    %c0_42 = arith.constant 0 : index
    %52 = vector.load %arg17[%c0_41, %c0_42] : memref<4x12xf32, #tpu.memory_space<vmem>>, vector<4x12xf32>
    %c0_43 = arith.constant 0 : index
    %c0_44 = arith.constant 0 : index
    %53 = vector.load %arg18[%c0_43, %c0_44] : memref<4x1xf32, #tpu.memory_space<vmem>>, vector<4x1xf32>
    %cst_45 = arith.constant dense<0.000000e+00> : vector<4x256xf32>
    %54 = tpu.matmul %52, %51, %cst_45 {dimension_numbers = #tpu.dot_dimension_numbers<[1], [0], [0], [1], [0, 0, 1, 1], [], []>} : vector<4x12xf32>, vector<12x256xf32>, vector<4x256xf32> -> vector<4x256xf32>
    %55 = vector.broadcast %53 : vector<4x1xf32> to vector<4x256xf32>
    %56 = arith.addf %54, %55 : vector<4x256xf32>
    %c0_46 = arith.constant 0 : index
    %c0_47 = arith.constant 0 : index
    %57 = vector.load %arg19[%c0_46, %c0_47] : memref<4x256xf32, #tpu.memory_space<vmem>>, vector<4x256xf32>
    tpu.vector_store %arg19[%c0_46, %c0_47], %56 {strides = array<i32>} : memref<4x256xf32, #tpu.memory_space<vmem>>, vector<4x256xf32>,
    return
  }
  func.func @transform_0(%arg0: i32) -> (i32, i32) {
    %c0_i32 = arith.constant 0 : i32
    %c0_i32_0 = arith.constant 0 : i32
    return %c0_i32, %arg0 : i32, i32
  }
  func.func @transform_1(%arg0: i32) -> (i32, i32) {
    %c0_i32 = arith.constant 0 : i32
    %c0_i32_0 = arith.constant 0 : i32
    %c0_i32_1 = arith.constant 0 : i32
    return %c0_i32, %c0_i32_0 : i32, i32
  }
  func.func @transform_2(%arg0: i32) -> (i32, i32) {
    %c0_i32 = arith.constant 0 : i32
    %c0_i32_0 = arith.constant 0 : i32
    %c0_i32_1 = arith.constant 0 : i32
    return %c0_i32, %c0_i32_0 : i32, i32
  }
  func.func @transform_3(%arg0: i32) -> (i32, i32) {
    %c0_i32 = arith.constant 0 : i32
    %c0_i32_0 = arith.constant 0 : i32
    %c0_i32_1 = arith.constant 0 : i32
    return %c0_i32, %c0_i32_0 : i32, i32
  }
  func.func @transform_4(%arg0: i32) -> (i32, i32) {
    %c0_i32 = arith.constant 0 : i32
    %c0_i32_0 = arith.constant 0 : i32
    %c0_i32_1 = arith.constant 0 : i32
    return %c0_i32, %c0_i32_0 : i32, i32
  }
  func.func @transform_5(%arg0: i32) -> (i32, i32) {
    %c0_i32 = arith.constant 0 : i32
    %c0_i32_0 = arith.constant 0 : i32
    %c0_i32_1 = arith.constant 0 : i32
    return %c0_i32, %c0_i32_0 : i32, i32
  }
  func.func @transform_6(%arg0: i32) -> (i32, i32) {
    %c0_i32 = arith.constant 0 : i32
    %c0_i32_0 = arith.constant 0 : i32
    %c0_i32_1 = arith.constant 0 : i32
    return %c0_i32, %c0_i32_0 : i32, i32
  }
  func.func @transform_7(%arg0: i32) -> (i32, i32) {
    %c0_i32 = arith.constant 0 : i32
    %c0_i32_0 = arith.constant 0 : i32
    %c0_i32_1 = arith.constant 0 : i32
    return %c0_i32, %c0_i32_0 : i32, i32
  }
  func.func @transform_8(%arg0: i32) -> (i32, i32) {
    %c0_i32 = arith.constant 0 : i32
    %c0_i32_0 = arith.constant 0 : i32
    %c0_i32_1 = arith.constant 0 : i32
    return %c0_i32, %c0_i32_0 : i32, i32
  }
  func.func @transform_9(%arg0: i32) -> (i32, i32) {
    %c0_i32 = arith.constant 0 : i32
    %c0_i32_0 = arith.constant 0 : i32
    %c0_i32_1 = arith.constant 0 : i32
    return %c0_i32, %c0_i32_0 : i32, i32
  }
  func.func @transform_10(%arg0: i32) -> (i32, i32) {
    %c0_i32 = arith.constant 0 : i32
    %c0_i32_0 = arith.constant 0 : i32
    %c0_i32_1 = arith.constant 0 : i32
    return %c0_i32, %c0_i32_0 : i32, i32
  }
  func.func @transform_11(%arg0: i32) -> (i32, i32) {
    %c0_i32 = arith.constant 0 : i32
    %c0_i32_0 = arith.constant 0 : i32
    %c0_i32_1 = arith.constant 0 : i32
    return %c0_i32, %c0_i32_0 : i32, i32
  }
  func.func @transform_12(%arg0: i32) -> (i32, i32) {
    %c0_i32 = arith.constant 0 : i32
    %c0_i32_0 = arith.constant 0 : i32
    %c0_i32_1 = arith.constant 0 : i32
    return %c0_i32, %c0_i32_0 : i32, i32
  }
  func.func @transform_13(%arg0: i32) -> (i32, i32) {
    %c0_i32 = arith.constant 0 : i32
    %c0_i32_0 = arith.constant 0 : i32
    %c0_i32_1 = arith.constant 0 : i32
    return %c0_i32, %c0_i32_0 : i32, i32
  }
  func.func @transform_14(%arg0: i32) -> (i32, i32) {
    %c0_i32 = arith.constant 0 : i32
    %c0_i32_0 = arith.constant 0 : i32
    %c0_i32_1 = arith.constant 0 : i32
    return %c0_i32, %c0_i32_0 : i32, i32
  }
  func.func @transform_15(%arg0: i32) -> (i32, i32) {
    %c0_i32 = arith.constant 0 : i32
    %c0_i32_0 = arith.constant 0 : i32
    %c0_i32_1 = arith.constant 0 : i32
    return %c0_i32, %c0_i32_0 : i32, i32
  }
  func.func @transform_16(%arg0: i32) -> (i32, i32) {
    %c0_i32 = arith.constant 0 : i32
    %c0_i32_0 = arith.constant 0 : i32
    %c0_i32_1 = arith.constant 0 : i32
    return %c0_i32, %c0_i32_0 : i32, i32
  }
  func.func @transform_17(%arg0: i32) -> (i32, i32) {
    %c0_i32 = arith.constant 0 : i32
    %c0_i32_0 = arith.constant 0 : i32
    %c0_i32_1 = arith.constant 0 : i32
    return %c0_i32, %c0_i32_0 : i32, i32
  }
  func.func @transform_18(%arg0: i32) -> (i32, i32) {
    %c0_i32 = arith.constant 0 : i32
    %c0_i32_0 = arith.constant 0 : i32
    return %c0_i32, %arg0 : i32, i32
  }
}

</mosaic_0001>

<llo_original>
// kernel: tpu_custom_call.1
$region0: #{tpu_custom_call.1}
  #allocation0 [shape = 'u32[]', space=smem, size = 0x4, offset = 0x4, fixed_abs, tag = 'smem constant byte address 0x4 - core index']
  #allocation1 [shape = 'u32[144,128]{1,0:T(1,128)}', space=vmem, size = 0x12000, scoped, tag = 'internal scratch']
  %s0 = inlined_call_operand.vmem [shape: f32[24,512], index: 0, kind: input, shape index: {}]
  %s1 = inlined_call_operand.vmem [shape: f32[24,4], index: 1, kind: input, shape index: {}]
  %s2 = inlined_call_operand.vmem [shape: f32[4,24], index: 2, kind: input, shape index: {}]
  %s3 = inlined_call_operand.vmem [shape: f32[24,1], index: 3, kind: input, shape index: {}]
  %s4 = inlined_call_operand.vmem [shape: f32[48,24], index: 4, kind: input, shape index: {}]
  %s5 = inlined_call_operand.vmem [shape: f32[48,1], index: 5, kind: input, shape index: {}]
  %s6 = inlined_call_operand.vmem [shape: f32[36,48], index: 6, kind: input, shape index: {}]
  %s7 = inlined_call_operand.vmem [shape: f32[36,1], index: 7, kind: input, shape index: {}]
  %s8 = inlined_call_operand.vmem [shape: f32[36,36], index: 8, kind: input, shape index: {}]
  %s9 = inlined_call_operand.vmem [shape: f32[36,1], index: 9, kind: input, shape index: {}]
  %s10 = inlined_call_operand.vmem [shape: f32[24,36], index: 10, kind: input, shape index: {}]
  %s11 = inlined_call_operand.vmem [shape: f32[24,1], index: 11, kind: input, shape index: {}]
  %s12 = inlined_call_operand.vmem [shape: f32[24,24], index: 12, kind: input, shape index: {}]
  %s13 = inlined_call_operand.vmem [shape: f32[24,1], index: 13, kind: input, shape index: {}]
  %s14 = inlined_call_operand.vmem [shape: f32[12,24], index: 14, kind: input, shape index: {}]
  %s15 = inlined_call_operand.vmem [shape: f32[12,1], index: 15, kind: input, shape index: {}]
  %s16 = inlined_call_operand.vmem [shape: f32[4,12], index: 16, kind: input, shape index: {}]
  %s17 = inlined_call_operand.vmem [shape: f32[4,1], index: 17, kind: input, shape index: {}]
  %s18 = inlined_call_operand.hbm [shape: f32[4,512], index: 18, kind: output, shape index: {}]
  %s19 = sld [smem:[#allocation0]]
  $region128: #{tpu_custom_call.1} parent=0
    _
  %s21 = ssub.s32 1, %s19
  %s22 = scalar_select 0, %s21, %s19
  $region1: #{tpu_custom_call.1} parent=0
    #allocation2 [shape = 'u8[49152]{0}', space=vmem, size = 0xc000, scoped, tag = 'input window, operand 0']
    #allocation3 [shape = 'u8[8192]{0}', space=vmem, size = 0x2000, scoped, tag = 'output window, operand 0']
    #allocation4 [shape = 's32[2]{0}', space=sflag, size = 0x8, scoped, tag = 'scoped memory for tpu_custom_call.1']
    %23 = vsyncpa [#allocation4], 0
    %s24 = scalar_lea.sflag [#allocation4], 1
    %25 = vsyncpa %s24, 0
    loop: start=0, step=1, limit=4
    $region2: #{tpu_custom_call.1} parent=1 // loop_pre_header
      _
    $region3: #{tpu_custom_call.1} parent=1 // loop_header
      %s27 = sphi 0, %s31
      %p28 = scmp.ge.s32.totalorder %s27, 4
      %s37 = sphi 0, %s39
      %s40 = sphi 0, %s37
      %s41 = sphi 0, %s40
      %s57 = sphi 0, %s41
      %s61 = sphi 0, %s61
      %s63 = sphi 0, %s61
      %s64 = sphi 0, %s63
      %s78 = sphi 0, %s64
      %s82 = sphi 0, %s82
      %s84 = sphi 0, %s82
      %s85 = sphi 0, %s84
      %s99 = sphi 0, %s85
      %s103 = sphi 0, %s103
      %s105 = sphi 0, %s103
      %s106 = sphi 0, %s105
      %s120 = sphi 0, %s106
      %s124 = sphi 0, %s124
      %s126 = sphi 0, %s124
      %s127 = sphi 0, %s126
      %s141 = sphi 0, %s127
      %s145 = sphi 0, %s145
      %s147 = sphi 0, %s145
      %s148 = sphi 0, %s147
      %s162 = sphi 0, %s148
      %s166 = sphi 0, %s166
      %s168 = sphi 0, %s166
      %s169 = sphi 0, %s168
      %s183 = sphi 0, %s169
      %s187 = sphi 0, %s187
      %s189 = sphi 0, %s187
      %s190 = sphi 0, %s189
      %s204 = sphi 0, %s190
      %s208 = sphi 0, %s208
      %s210 = sphi 0, %s208
      %s211 = sphi 0, %s210
      %s225 = sphi 0, %s211
      %s229 = sphi 0, %s229
      %s231 = sphi 0, %s229
      %s232 = sphi 0, %s231
      %s246 = sphi 0, %s232
      %s250 = sphi 0, %s250
      %s252 = sphi 0, %s250
      %s253 = sphi 0, %s252
      %s267 = sphi 0, %s253
      %s271 = sphi 0, %s271
      %s273 = sphi 0, %s271
      %s274 = sphi 0, %s273
      %s288 = sphi 0, %s274
      %s292 = sphi 0, %s292
      %s294 = sphi 0, %s292
      %s295 = sphi 0, %s294
      %s309 = sphi 0, %s295
      %s313 = sphi 0, %s313
      %s315 = sphi 0, %s313
      %s316 = sphi 0, %s315
      %s330 = sphi 0, %s316
      %s334 = sphi 0, %s334
      %s336 = sphi 0, %s334
      %s337 = sphi 0, %s336
      %s351 = sphi 0, %s337
      %s355 = sphi 0, %s355
      %s357 = sphi 0, %s355
      %s358 = sphi 0, %s357
      %s372 = sphi 0, %s358
      %s376 = sphi 0, %s376
      %s378 = sphi 0, %s376
      %s379 = sphi 0, %s378
      %s393 = sphi 0, %s379
      %s397 = sphi 0, %s397
      %s399 = sphi 0, %s397
      %s400 = sphi 0, %s399
      %s414 = sphi 0, %s400
      %s420 = sphi 0, %s422
      %s423 = sphi 0, %s420
      %s424 = sphi 0, %s423
      %s440 = sphi 0, %s424
    $region4: #{tpu_custom_call.1} parent=1 // loop_header_branch
      %30 = sbr.rel (%p28) target = $region8
    $region5: #{tpu_custom_call.1} parent=1 // loop_body
      %s32 = ssub.s32 %s27, 1
      %s33 = ssub.s32 %s27, 2
      %s34 = sadd.s32 %s27, 1
      %s35 = ssub.s32 %s27, %s34
      %p36 = scmp.eq.s32.totalorder %s35, 0
      %s38 = sadd.s32 %s37, 1
      %s39 = scalar_select %p36, %s37, %s38
      %p42 = pneg %p36
      %p43 = scmp.eq.s32.totalorder %s27, 1
      %p44 = por %p42, %p43
      %p45 = scmp.ne.s32.totalorder %s37, %s40
      %p46 = scmp.eq.s32.totalorder %s27, 0
      %p47 = por %p45, %p46
      %p48 = scmp.ne.s32.totalorder %s37, %s40
      %p49 = scmp.eq.s32.totalorder %s32, 1
      %p50 = por %p48, %p49
      %p51 = scmp.ne.s32.totalorder %s40, %s41
      %p52 = scmp.eq.s32.totalorder %s32, 0
      %p53 = por %p51, %p52
      %p54 = scmp.ne.s32.totalorder %s40, %s41
      %p55 = scmp.eq.s32.totalorder %s33, 1
      %p56 = por %p54, %p55
      %p58 = scmp.ne.s32.totalorder %s41, %s57
      %p59 = scmp.eq.s32.totalorder %s33, 0
      %p60 = por %p58, %p59
      %s62 = sadd.s32 %s61, 1
      %p65 = scmp.eq.s32.totalorder %s27, 1
      %p66 = scmp.ne.s32.totalorder %s61, %s63
      %p67 = scmp.eq.s32.totalorder %s27, 0
      %p68 = por %p66, %p67
      %p69 = scmp.ne.s32.totalorder %s61, %s63
      %p70 = scmp.eq.s32.totalorder %s32, 1
      %p71 = por %p69, %p70
      %p72 = scmp.ne.s32.totalorder %s63, %s64
      %p73 = scmp.eq.s32.totalorder %s32, 0
      %p74 = por %p72, %p73
      %p75 = scmp.ne.s32.totalorder %s63, %s64
      %p76 = scmp.eq.s32.totalorder %s33, 1
      %p77 = por %p75, %p76
      %p79 = scmp.ne.s32.totalorder %s64, %s78
      %p80 = scmp.eq.s32.totalorder %s33, 0
      %p81 = por %p79, %p80
      %s83 = sadd.s32 %s82, 1
      %p86 = scmp.eq.s32.totalorder %s27, 1
      %p87 = scmp.ne.s32.totalorder %s82, %s84
      %p88 = scmp.eq.s32.totalorder %s27, 0
      %p89 = por %p87, %p88
      %p90 = scmp.ne.s32.totalorder %s82, %s84
      %p91 = scmp.eq.s32.totalorder %s32, 1
      %p92 = por %p90, %p91
      %p93 = scmp.ne.s32.totalorder %s84, %s85
      %p94 = scmp.eq.s32.totalorder %s32, 0
      %p95 = por %p93, %p94
      %p96 = scmp.ne.s32.totalorder %s84, %s85
      %p97 = scmp.eq.s32.totalorder %s33, 1
      %p98 = por %p96, %p97
      %p100 = scmp.ne.s32.totalorder %s85, %s99
      %p101 = scmp.eq.s32.totalorder %s33, 0
      %p102 = por %p100, %p101
      %s104 = sadd.s32 %s103, 1
      %p107 = scmp.eq.s32.totalorder %s27, 1
      %p108 = scmp.ne.s32.totalorder %s103, %s105
      %p109 = scmp.eq.s32.totalorder %s27, 0
      %p110 = por %p108, %p109
      %p111 = scmp.ne.s32.totalorder %s103, %s105
      %p112 = scmp.eq.s32.totalorder %s32, 1
      %p113 = por %p111, %p112
      %p114 = scmp.ne.s32.totalorder %s105, %s106
      %p115 = scmp.eq.s32.totalorder %s32, 0
      %p116 = por %p114, %p115
      %p117 = scmp.ne.s32.totalorder %s105, %s106
      %p118 = scmp.eq.s32.totalorder %s33, 1
      %p119 = por %p117, %p118
      %p121 = scmp.ne.s32.totalorder %s106, %s120
      %p122 = scmp.eq.s32.totalorder %s33, 0
      %p123 = por %p121, %p122
      %s125 = sadd.s32 %s124, 1
      %p128 = scmp.eq.s32.totalorder %s27, 1
      %p129 = scmp.ne.s32.totalorder %s124, %s126
      %p130 = scmp.eq.s32.totalorder %s27, 0
      %p131 = por %p129, %p130
      %p132 = scmp.ne.s32.totalorder %s124, %s126
      %p133 = scmp.eq.s32.totalorder %s32, 1
      %p134 = por %p132, %p133
      %p135 = scmp.ne.s32.totalorder %s126, %s127
      %p136 = scmp.eq.s32.totalorder %s32, 0
      %p137 = por %p135, %p136
      %p138 = scmp.ne.s32.totalorder %s126, %s127
      %p139 = scmp.eq.s32.totalorder %s33, 1
      %p140 = por %p138, %p139
      %p142 = scmp.ne.s32.totalorder %s127, %s141
      %p143 = scmp.eq.s32.totalorder %s33, 0
      %p144 = por %p142, %p143
      %s146 = sadd.s32 %s145, 1
      %p149 = scmp.eq.s32.totalorder %s27, 1
      %p150 = scmp.ne.s32.totalorder %s145, %s147
      %p151 = scmp.eq.s32.totalorder %s27, 0
      %p152 = por %p150, %p151
      %p153 = scmp.ne.s32.totalorder %s145, %s147
      %p154 = scmp.eq.s32.totalorder %s32, 1
      %p155 = por %p153, %p154
      %p156 = scmp.ne.s32.totalorder %s147, %s148
      %p157 = scmp.eq.s32.totalorder %s32, 0
      %p158 = por %p156, %p157
      %p159 = scmp.ne.s32.totalorder %s147, %s148
      %p160 = scmp.eq.s32.totalorder %s33, 1
      %p161 = por %p159, %p160
      %p163 = scmp.ne.s32.totalorder %s148, %s162
      %p164 = scmp.eq.s32.totalorder %s33, 0
      %p165 = por %p163, %p164
      %s167 = sadd.s32 %s166, 1
      %p170 = scmp.eq.s32.totalorder %s27, 1
      %p171 = scmp.ne.s32.totalorder %s166, %s168
      %p172 = scmp.eq.s32.totalorder %s27, 0
      %p173 = por %p171, %p172
      %p174 = scmp.ne.s32.totalorder %s166, %s168
      %p175 = scmp.eq.s32.totalorder %s32, 1
      %p176 = por %p174, %p175
      %p177 = scmp.ne.s32.totalorder %s168, %s169
      %p178 = scmp.eq.s32.totalorder %s32, 0
      %p179 = por %p177, %p178
      %p180 = scmp.ne.s32.totalorder %s168, %s169
      %p181 = scmp.eq.s32.totalorder %s33, 1
      %p182 = por %p180, %p181
      %p184 = scmp.ne.s32.totalorder %s169, %s183
      %p185 = scmp.eq.s32.totalorder %s33, 0
      %p186 = por %p184, %p185
      %s188 = sadd.s32 %s187, 1
      %p191 = scmp.eq.s32.totalorder %s27, 1
      %p192 = scmp.ne.s32.totalorder %s187, %s189
      %p193 = scmp.eq.s32.totalorder %s27, 0
      %p194 = por %p192, %p193
      %p195 = scmp.ne.s32.totalorder %s187, %s189
      %p196 = scmp.eq.s32.totalorder %s32, 1
      %p197 = por %p195, %p196
      %p198 = scmp.ne.s32.totalorder %s189, %s190
      %p199 = scmp.eq.s32.totalorder %s32, 0
      %p200 = por %p198, %p199
      %p201 = scmp.ne.s32.totalorder %s189, %s190
      %p202 = scmp.eq.s32.totalorder %s33, 1
      %p203 = por %p201, %p202
      %p205 = scmp.ne.s32.totalorder %s190, %s204
      %p206 = scmp.eq.s32.totalorder %s33, 0
      %p207 = por %p205, %p206
      %s209 = sadd.s32 %s208, 1
      %p212 = scmp.eq.s32.totalorder %s27, 1
      %p213 = scmp.ne.s32.totalorder %s208, %s210
      %p214 = scmp.eq.s32.totalorder %s27, 0
      %p215 = por %p213, %p214
      %p216 = scmp.ne.s32.totalorder %s208, %s210
      %p217 = scmp.eq.s32.totalorder %s32, 1
      %p218 = por %p216, %p217
      %p219 = scmp.ne.s32.totalorder %s210, %s211
      %p220 = scmp.eq.s32.totalorder %s32, 0
      %p221 = por %p219, %p220
      %p222 = scmp.ne.s32.totalorder %s210, %s211
      %p223 = scmp.eq.s32.totalorder %s33, 1
      %p224 = por %p222, %p223
      %p226 = scmp.ne.s32.totalorder %s211, %s225
      %p227 = scmp.eq.s32.totalorder %s33, 0
      %p228 = por %p226, %p227
      %s230 = sadd.s32 %s229, 1
      %p233 = scmp.eq.s32.totalorder %s27, 1
      %p234 = scmp.ne.s32.totalorder %s229, %s231
      %p235 = scmp.eq.s32.totalorder %s27, 0
      %p236 = por %p234, %p235
      %p237 = scmp.ne.s32.totalorder %s229, %s231
      %p238 = scmp.eq.s32.totalorder %s32, 1
      %p239 = por %p237, %p238
      %p240 = scmp.ne.s32.totalorder %s231, %s232
      %p241 = scmp.eq.s32.totalorder %s32, 0
      %p242 = por %p240, %p241
      %p243 = scmp.ne.s32.totalorder %s231, %s232
      %p244 = scmp.eq.s32.totalorder %s33, 1
      %p245 = por %p243, %p244
      %p247 = scmp.ne.s32.totalorder %s232, %s246
      %p248 = scmp.eq.s32.totalorder %s33, 0
      %p249 = por %p247, %p248
      %s251 = sadd.s32 %s250, 1
      %p254 = scmp.eq.s32.totalorder %s27, 1
      %p255 = scmp.ne.s32.totalorder %s250, %s252
      %p256 = scmp.eq.s32.totalorder %s27, 0
      %p257 = por %p255, %p256
      %p258 = scmp.ne.s32.totalorder %s250, %s252
      %p259 = scmp.eq.s32.totalorder %s32, 1
      %p260 = por %p258, %p259
      %p261 = scmp.ne.s32.totalorder %s252, %s253
      %p262 = scmp.eq.s32.totalorder %s32, 0
      %p263 = por %p261, %p262
      %p264 = scmp.ne.s32.totalorder %s252, %s253
      %p265 = scmp.eq.s32.totalorder %s33, 1
      %p266 = por %p264, %p265
      %p268 = scmp.ne.s32.totalorder %s253, %s267
      %p269 = scmp.eq.s32.totalorder %s33, 0
      %p270 = por %p268, %p269
      %s272 = sadd.s32 %s271, 1
      %p275 = scmp.eq.s32.totalorder %s27, 1
      %p276 = scmp.ne.s32.totalorder %s271, %s273
      %p277 = scmp.eq.s32.totalorder %s27, 0
      %p278 = por %p276, %p277
      %p279 = scmp.ne.s32.totalorder %s271, %s273
      %p280 = scmp.eq.s32.totalorder %s32, 1
      %p281 = por %p279, %p280
      %p282 = scmp.ne.s32.totalorder %s273, %s274
      %p283 = scmp.eq.s32.totalorder %s32, 0
      %p284 = por %p282, %p283
      %p285 = scmp.ne.s32.totalorder %s273, %s274
      %p286 = scmp.eq.s32.totalorder %s33, 1
      %p287 = por %p285, %p286
      %p289 = scmp.ne.s32.totalorder %s274, %s288
      %p290 = scmp.eq.s32.totalorder %s33, 0
      %p291 = por %p289, %p290
      %s293 = sadd.s32 %s292, 1
      %p296 = scmp.eq.s32.totalorder %s27, 1
      %p297 = scmp.ne.s32.totalorder %s292, %s294
      %p298 = scmp.eq.s32.totalorder %s27, 0
      %p299 = por %p297, %p298
      %p300 = scmp.ne.s32.totalorder %s292, %s294
      %p301 = scmp.eq.s32.totalorder %s32, 1
      %p302 = por %p300, %p301
      %p303 = scmp.ne.s32.totalorder %s294, %s295
      %p304 = scmp.eq.s32.totalorder %s32, 0
      %p305 = por %p303, %p304
      %p306 = scmp.ne.s32.totalorder %s294, %s295
      %p307 = scmp.eq.s32.totalorder %s33, 1
      %p308 = por %p306, %p307
      %p310 = scmp.ne.s32.totalorder %s295, %s309
      %p311 = scmp.eq.s32.totalorder %s33, 0
      %p312 = por %p310, %p311
      %s314 = sadd.s32 %s313, 1
      %p317 = scmp.eq.s32.totalorder %s27, 1
      %p318 = scmp.ne.s32.totalorder %s313, %s315
      %p319 = scmp.eq.s32.totalorder %s27, 0
      %p320 = por %p318, %p319
      %p321 = scmp.ne.s32.totalorder %s313, %s315
      %p322 = scmp.eq.s32.totalorder %s32, 1
      %p323 = por %p321, %p322
      %p324 = scmp.ne.s32.totalorder %s315, %s316
      %p325 = scmp.eq.s32.totalorder %s32, 0
      %p326 = por %p324, %p325
      %p327 = scmp.ne.s32.totalorder %s315, %s316
      %p328 = scmp.eq.s32.totalorder %s33, 1
      %p329 = por %p327, %p328
      %p331 = scmp.ne.s32.totalorder %s316, %s330
      %p332 = scmp.eq.s32.totalorder %s33, 0
      %p333 = por %p331, %p332
      %s335 = sadd.s32 %s334, 1
      %p338 = scmp.eq.s32.totalorder %s27, 1
      %p339 = scmp.ne.s32.totalorder %s334, %s336
      %p340 = scmp.eq.s32.totalorder %s27, 0
      %p341 = por %p339, %p340
      %p342 = scmp.ne.s32.totalorder %s334, %s336
      %p343 = scmp.eq.s32.totalorder %s32, 1
      %p344 = por %p342, %p343
      %p345 = scmp.ne.s32.totalorder %s336, %s337
      %p346 = scmp.eq.s32.totalorder %s32, 0
      %p347 = por %p345, %p346
      %p348 = scmp.ne.s32.totalorder %s336, %s337
      %p349 = scmp.eq.s32.totalorder %s33, 1
      %p350 = por %p348, %p349
      %p352 = scmp.ne.s32.totalorder %s337, %s351
      %p353 = scmp.eq.s32.totalorder %s33, 0
      %p354 = por %p352, %p353
      %s356 = sadd.s32 %s355, 1
      %p359 = scmp.eq.s32.totalorder %s27, 1
      %p360 = scmp.ne.s32.totalorder %s355, %s357
      %p361 = scmp.eq.s32.totalorder %s27, 0
      %p362 = por %p360, %p361
      %p363 = scmp.ne.s32.totalorder %s355, %s357
      %p364 = scmp.eq.s32.totalorder %s32, 1
      %p365 = por %p363, %p364
      %p366 = scmp.ne.s32.totalorder %s357, %s358
      %p367 = scmp.eq.s32.totalorder %s32, 0
      %p368 = por %p366, %p367
      %p369 = scmp.ne.s32.totalorder %s357, %s358
      %p370 = scmp.eq.s32.totalorder %s33, 1
      %p371 = por %p369, %p370
      %p373 = scmp.ne.s32.totalorder %s358, %s372
      %p374 = scmp.eq.s32.totalorder %s33, 0
      %p375 = por %p373, %p374
      %s377 = sadd.s32 %s376, 1
      %p380 = scmp.eq.s32.totalorder %s27, 1
      %p381 = scmp.ne.s32.totalorder %s376, %s378
      %p382 = scmp.eq.s32.totalorder %s27, 0
      %p383 = por %p381, %p382
      %p384 = scmp.ne.s32.totalorder %s376, %s378
      %p385 = scmp.eq.s32.totalorder %s32, 1
      %p386 = por %p384, %p385
      %p387 = scmp.ne.s32.totalorder %s378, %s379
      %p388 = scmp.eq.s32.totalorder %s32, 0
      %p389 = por %p387, %p388
      %p390 = scmp.ne.s32.totalorder %s378, %s379
      %p391 = scmp.eq.s32.totalorder %s33, 1
      %p392 = por %p390, %p391
      %p394 = scmp.ne.s32.totalorder %s379, %s393
      %p395 = scmp.eq.s32.totalorder %s33, 0
      %p396 = por %p394, %p395
      %s398 = sadd.s32 %s397, 1
      %p401 = scmp.eq.s32.totalorder %s27, 1
      %p402 = scmp.ne.s32.totalorder %s397, %s399
      %p403 = scmp.eq.s32.totalorder %s27, 0
      %p404 = por %p402, %p403
      %p405 = scmp.ne.s32.totalorder %s397, %s399
      %p406 = scmp.eq.s32.totalorder %s32, 1
      %p407 = por %p405, %p406
      %p408 = scmp.ne.s32.totalorder %s399, %s400
      %p409 = scmp.eq.s32.totalorder %s32, 0
      %p410 = por %p408, %p409
      %p411 = scmp.ne.s32.totalorder %s399, %s400
      %p412 = scmp.eq.s32.totalorder %s33, 1
      %p413 = por %p411, %p412
      %p415 = scmp.ne.s32.totalorder %s400, %s414
      %p416 = scmp.eq.s32.totalorder %s33, 0
      %p417 = por %p415, %p416
      %s418 = ssub.s32 %s27, %s34
      %p419 = scmp.eq.s32.totalorder %s418, 0
      %s421 = sadd.s32 %s420, 1
      %s422 = scalar_select %p419, %s420, %s421
      %p425 = pneg %p419
      %p426 = scmp.eq.s32.totalorder %s27, 1
      %p427 = por %p425, %p426
      %p428 = scmp.ne.s32.totalorder %s420, %s423
      %p429 = scmp.eq.s32.totalorder %s27, 0
      %p430 = por %p428, %p429
      %p431 = scmp.ne.s32.totalorder %s420, %s423
      %p432 = scmp.eq.s32.totalorder %s32, 1
      %p433 = por %p431, %p432
      %p434 = scmp.ne.s32.totalorder %s423, %s424
      %p435 = scmp.eq.s32.totalorder %s32, 0
      %p436 = por %p434, %p435
      %p437 = scmp.ne.s32.totalorder %s423, %s424
      %p438 = scmp.eq.s32.totalorder %s33, 1
      %p439 = por %p437, %p438
      %p441 = scmp.ne.s32.totalorder %s424, %s440
      %p442 = scmp.eq.s32.totalorder %s33, 0
      %p443 = por %p441, %p442
      %p444 = scmp.le.s32.totalorder 1, %s27
      %p445 = scmp.lt.s32.totalorder %s27, 3
      %p446 = pnand %p444, %p445
      %p447 = pneg %p446
      // Predicated region
      $region9: #{tpu_custom_call.1} parent=5 // pred_check
        _
      $region10: #{tpu_custom_call.1} parent=5 // pred_check_branch
        %449 = sbr.rel (%p446) target = $region12
      $region11: #{tpu_custom_call.1} parent=5 // pred_region
        %s450 = ssub.s32 %s27, 1
        // Predicated region
        $region13: #{tpu_custom_call.1} parent=11 // pred_check
          %p451 = pneg %p74
        $region14: #{tpu_custom_call.1} parent=11 // pred_check_branch
          %453 = sbr.rel (%p451) target = $region16
        $region15: #{tpu_custom_call.1} parent=11 // pred_region
          _
        $region16: #{tpu_custom_call.1} parent=11 // pred_fallthru
          _
        // Predicated region
        $region17: #{tpu_custom_call.1} parent=11 // pred_check
          %p454 = pneg %p95
        $region18: #{tpu_custom_call.1} parent=11 // pred_check_branch
          %456 = sbr.rel (%p454) target = $region20
        $region19: #{tpu_custom_call.1} parent=11 // pred_region
          _
        $region20: #{tpu_custom_call.1} parent=11 // pred_fallthru
          _
        // Predicated region
        $region21: #{tpu_custom_call.1} parent=11 // pred_check
          %p457 = pneg %p116
        $region22: #{tpu_custom_call.1} parent=11 // pred_check_branch
          %459 = sbr.rel (%p457) target = $region24
        $region23: #{tpu_custom_call.1} parent=11 // pred_region
          _
        $region24: #{tpu_custom_call.1} parent=11 // pred_fallthru
          _
        // Predicated region
        $region25: #{tpu_custom_call.1} parent=11 // pred_check
          %p460 = pneg %p137
        $region26: #{tpu_custom_call.1} parent=11 // pred_check_branch
          %462 = sbr.rel (%p460) target = $region28
        $region27: #{tpu_custom_call.1} parent=11 // pred_region
          _
        $region28: #{tpu_custom_call.1} parent=11 // pred_fallthru
          _
        // Predicated region
        $region29: #{tpu_custom_call.1} parent=11 // pred_check
          %p463 = pneg %p158
        $region30: #{tpu_custom_call.1} parent=11 // pred_check_branch
          %465 = sbr.rel (%p463) target = $region32
        $region31: #{tpu_custom_call.1} parent=11 // pred_region
          _
        $region32: #{tpu_custom_call.1} parent=11 // pred_fallthru
          _
        // Predicated region
        $region33: #{tpu_custom_call.1} parent=11 // pred_check
          %p466 = pneg %p179
        $region34: #{tpu_custom_call.1} parent=11 // pred_check_branch
          %468 = sbr.rel (%p466) target = $region36
        $region35: #{tpu_custom_call.1} parent=11 // pred_region
          _
        $region36: #{tpu_custom_call.1} parent=11 // pred_fallthru
          _
        // Predicated region
        $region37: #{tpu_custom_call.1} parent=11 // pred_check
          %p469 = pneg %p200
        $region38: #{tpu_custom_call.1} parent=11 // pred_check_branch
          %471 = sbr.rel (%p469) target = $region40
        $region39: #{tpu_custom_call.1} parent=11 // pred_region
          _
        $region40: #{tpu_custom_call.1} parent=11 // pred_fallthru
          _
        // Predicated region
        $region41: #{tpu_custom_call.1} parent=11 // pred_check
          %p472 = pneg %p221
        $region42: #{tpu_custom_call.1} parent=11 // pred_check_branch
          %474 = sbr.rel (%p472) target = $region44
        $region43: #{tpu_custom_call.1} parent=11 // pred_region
          _
        $region44: #{tpu_custom_call.1} parent=11 // pred_fallthru
          _
        // Predicated region
        $region45: #{tpu_custom_call.1} parent=11 // pred_check
          %p475 = pneg %p242
        $region46: #{tpu_custom_call.1} parent=11 // pred_check_branch
          %477 = sbr.rel (%p475) target = $region48
        $region47: #{tpu_custom_call.1} parent=11 // pred_region
          _
        $region48: #{tpu_custom_call.1} parent=11 // pred_fallthru
          _
        // Predicated region
        $region49: #{tpu_custom_call.1} parent=11 // pred_check
          %p478 = pneg %p263
        $region50: #{tpu_custom_call.1} parent=11 // pred_check_branch
          %480 = sbr.rel (%p478) target = $region52
        $region51: #{tpu_custom_call.1} parent=11 // pred_region
          _
        $region52: #{tpu_custom_call.1} parent=11 // pred_fallthru
          _
        // Predicated region
        $region53: #{tpu_custom_call.1} parent=11 // pred_check
          %p481 = pneg %p284
        $region54: #{tpu_custom_call.1} parent=11 // pred_check_branch
          %483 = sbr.rel (%p481) target = $region56
        $region55: #{tpu_custom_call.1} parent=11 // pred_region
          _
        $region56: #{tpu_custom_call.1} parent=11 // pred_fallthru
          _
        // Predicated region
        $region57: #{tpu_custom_call.1} parent=11 // pred_check
          %p484 = pneg %p305
        $region58: #{tpu_custom_call.1} parent=11 // pred_check_branch
          %486 = sbr.rel (%p484) target = $region60
        $region59: #{tpu_custom_call.1} parent=11 // pred_region
          _
        $region60: #{tpu_custom_call.1} parent=11 // pred_fallthru
          _
        // Predicated region
        $region61: #{tpu_custom_call.1} parent=11 // pred_check
          %p487 = pneg %p326
        $region62: #{tpu_custom_call.1} parent=11 // pred_check_branch
          %489 = sbr.rel (%p487) target = $region64
        $region63: #{tpu_custom_call.1} parent=11 // pred_region
          _
        $region64: #{tpu_custom_call.1} parent=11 // pred_fallthru
          _
        // Predicated region
        $region65: #{tpu_custom_call.1} parent=11 // pred_check
          %p490 = pneg %p347
        $region66: #{tpu_custom_call.1} parent=11 // pred_check_branch
          %492 = sbr.rel (%p490) target = $region68
        $region67: #{tpu_custom_call.1} parent=11 // pred_region
          _
        $region68: #{tpu_custom_call.1} parent=11 // pred_fallthru
          _
        // Predicated region
        $region69: #{tpu_custom_call.1} parent=11 // pred_check
          %p493 = pneg %p368
        $region70: #{tpu_custom_call.1} parent=11 // pred_check_branch
          %495 = sbr.rel (%p493) target = $region72
        $region71: #{tpu_custom_call.1} parent=11 // pred_region
          _
        $region72: #{tpu_custom_call.1} parent=11 // pred_fallthru
          _
        // Predicated region
        $region73: #{tpu_custom_call.1} parent=11 // pred_check
          %p496 = pneg %p389
        $region74: #{tpu_custom_call.1} parent=11 // pred_check_branch
          %498 = sbr.rel (%p496) target = $region76
        $region75: #{tpu_custom_call.1} parent=11 // pred_region
          _
        $region76: #{tpu_custom_call.1} parent=11 // pred_fallthru
          _
        // Predicated region
        $region77: #{tpu_custom_call.1} parent=11 // pred_check
          %p499 = pneg %p410
        $region78: #{tpu_custom_call.1} parent=11 // pred_check_branch
          %501 = sbr.rel (%p499) target = $region80
        $region79: #{tpu_custom_call.1} parent=11 // pred_region
          _
        $region80: #{tpu_custom_call.1} parent=11 // pred_fallthru
          _
      $region12: #{tpu_custom_call.1} parent=5 // pred_fallthru
        _
      %p502 = scmp.lt.s32.totalorder %s27, 2
      // Predicated region
      $region81: #{tpu_custom_call.1} parent=5 // pred_check
        %p503 = pneg %p502
      $region82: #{tpu_custom_call.1} parent=5 // pred_check_branch
        %505 = sbr.rel (%p503) target = $region84
      $region83: #{tpu_custom_call.1} parent=5 // pred_region
        // Predicated region
        $region85: #{tpu_custom_call.1} parent=83 // pred_check
          %p506 = pneg %p47
        $region86: #{tpu_custom_call.1} parent=83 // pred_check_branch
          %508 = sbr.rel (%p506) target = $region88
        $region87: #{tpu_custom_call.1} parent=83 // pred_region
          %s509 = sand.u32 %s37, 1
          %s510 = sand.u32 %s37, 1
          %s511 = smul.addr %s510, 48
          %s512 = scalar_lea.vmem [#allocation2], %s511
          %s513 = smul.u32 2, %s27
          %s514 = smul.addr %s513, 8
          %s515 = scalar_lea.vmem %s0, %s514
          // Predicated region
          $region89: #{tpu_custom_call.1} parent=87 // pred_check
            _
          $region90: #{tpu_custom_call.1} parent=87 // pred_check_branch
            %517 = sbr.rel (0) target = $region92
          $region91: #{tpu_custom_call.1} parent=87 // pred_region
            // Predicated region
            $region93: #{tpu_custom_call.1} parent=91 // pred_check
              _
            $region94: #{tpu_custom_call.1} parent=91 // pred_check_branch
              %519 = sbr.rel (0) target = $region96
            $region95: #{tpu_custom_call.1} parent=91 // pred_region
              loop: start=0, step=1, limit=1
              $region97: #{tpu_custom_call.1} parent=95 // loop_pre_header
                _
              $region98: #{tpu_custom_call.1} parent=95 // loop_header
                %s521 = sphi 0, %s525
                %p522 = scmp.ge.s32.totalorder %s521, 1
                %s526 = sphi %s515, %s515
                %s527 = sphi %s512, %s512
              $region99: #{tpu_custom_call.1} parent=95 // loop_header_branch
                %524 = sbr.rel (%p522) target = $region103
              $region100: #{tpu_custom_call.1} parent=95 // loop_body
                %v528 = vld [vmem:[%s526] sm:$0xff]
                %529 = vst [vmem:[%s527] sm:$0xff] %v528
                %v530 = vld [vmem:[%s526 + $0x8] sm:$0xff]
                %531 = vst [vmem:[%s527 + $0x8] sm:$0xff] %v530
                %v532 = vld [vmem:[%s526 + $0x20] sm:$0xff]
                %533 = vst [vmem:[%s527 + $0x10] sm:$0xff] %v532
                %v534 = vld [vmem:[%s526 + $0x28] sm:$0xff]
                %535 = vst [vmem:[%s527 + $0x18] sm:$0xff] %v534
                %v536 = vld [vmem:[%s526 + $0x40] sm:$0xff]
                %537 = vst [vmem:[%s527 + $0x20] sm:$0xff] %v536
                %v538 = vld [vmem:[%s526 + $0x48] sm:$0xff]
                %539 = vst [vmem:[%s527 + $0x28] sm:$0xff] %v538
              $region101: #{tpu_custom_call.1} parent=95 // loop_footer
                %s525 = sadd.s32 1, %s521
              $region102: #{tpu_custom_call.1} parent=95 // loop_footer_branch
                %520 = sbr.rel target = $region98
              $region103: #{tpu_custom_call.1} parent=95 // loop_exit
                _
            $region96: #{tpu_custom_call.1} parent=91 // pred_fallthru
              _
            // Predicated region
            $region104: #{tpu_custom_call.1} parent=91 // pred_check
              _
            $region105: #{tpu_custom_call.1} parent=91 // pred_check_branch
              %541 = sbr.rel target = $region107
            $region106: #{tpu_custom_call.1} parent=91 // pred_region
              _
            $region107: #{tpu_custom_call.1} parent=91 // pred_fallthru
              _
          $region92: #{tpu_custom_call.1} parent=87 // pred_fallthru
            _
          %542 = vnop
        $region88: #{tpu_custom_call.1} parent=83 // pred_fallthru
          _
      $region84: #{tpu_custom_call.1} parent=5 // pred_fallthru
        _
      %p543 = scmp.le.s32.totalorder 1, %s27
      %p544 = scmp.lt.s32.totalorder %s27, 3
      %p545 = pnand %p543, %p544
      %p546 = pneg %p545
      // Predicated region
      $region108: #{tpu_custom_call.1} parent=5 // pred_check
        _
      $region109: #{tpu_custom_call.1} parent=5 // pred_check_branch
        %548 = sbr.rel (%p545) target = $region111
      $region110: #{tpu_custom_call.1} parent=5 // pred_region
        %s549 = ssub.s32 %s27, 1
        %s550 = sand.u32 %s40, 1
        %s551 = sand.u32 %s40, 1
        %s552 = smul.addr %s551, 48
        %s553 = scalar_lea.vmem [#allocation2], %s552
        // Predicated region
        $region112: #{tpu_custom_call.1} parent=110 // pred_check
          %p554 = pneg %p53
        $region113: #{tpu_custom_call.1} parent=110 // pred_check_branch
          %556 = sbr.rel (%p554) target = $region115
        $region114: #{tpu_custom_call.1} parent=110 // pred_region
          _
        $region115: #{tpu_custom_call.1} parent=110 // pred_fallthru
          _
        %s557 = sand.u32 %s40, 1
        %s558 = sand.u32 %s40, 1
        %s559 = smul.addr %s558, 48
        %s560 = scalar_lea.vmem [#allocation2], %s559
        %p561 = pneg %p53
        %p562 = pneg %p50
        %p563 = pneg %p74
        %p564 = pneg %p71
        %p565 = pneg %p95
        %p566 = pneg %p92
        %p567 = pneg %p116
        %p568 = pneg %p113
        %p569 = pneg %p137
        %p570 = pneg %p134
        %p571 = pneg %p158
        %p572 = pneg %p155
        %p573 = pneg %p179
        %p574 = pneg %p176
        %p575 = pneg %p200
        %p576 = pneg %p197
        %p577 = pneg %p221
        %p578 = pneg %p218
        %p579 = pneg %p242
        %p580 = pneg %p239
        %p581 = pneg %p263
        %p582 = pneg %p260
        %p583 = pneg %p284
        %p584 = pneg %p281
        %p585 = pneg %p305
        %p586 = pneg %p302
        %p587 = pneg %p326
        %p588 = pneg %p323
        %p589 = pneg %p347
        %p590 = pneg %p344
        %p591 = pneg %p368
        %p592 = pneg %p365
        %p593 = pneg %p389
        %p594 = pneg %p386
        %p595 = pneg %p410
        %p596 = pneg %p407
        %p597 = pneg %p436
        %p598 = pneg %p433
        %s599 = sand.u32 %s423, 1
        %s600 = scalar_lea.sflag [#allocation4], %s599
        %s601 = sand.u32 %s423, 1
        %s602 = smul.addr %s601, 8
        %s603 = scalar_lea.vmem [#allocation3], %s602
        %s604 = smul.u32 2, %s32
        %s605 = smul.u32 2, %s32
        %v606 = vld [vmem:[%s553] sm:$0xff]
        %v607 = vld [vmem:[%s553 + $0x8] sm:$0xff]
        %v608 = vld [vmem:[%s553 + $0x10] sm:$0xff]
        %v609 = vld [vmem:[%s553 + $0x18] sm:$0xff]
        %v610 = vld [vmem:[%s553 + $0x20] sm:$0xff]
        %v611 = vld [vmem:[%s553 + $0x28] sm:$0xff]
        %v612 = vld [vmem:[%s1] sm:$0xff]
        %v613 = vld [vmem:[%s1 + $0x8] sm:$0xff]
        %v614 = vld [vmem:[%s1 + $0x10] sm:$0xff]
        %v615 = vld [vmem:[%s2] sm:$0xf]
        %v616 = vld [vmem:[%s3] sm:$0xff]
        %v617 = vld [vmem:[%s3 + $0x8] sm:$0xff]
        %v618 = vld [vmem:[%s3 + $0x10] sm:$0xff]
        %vm619 = vcmask 195584
        %v621 = vsel %vm619, %v615, 0
        %623 = vmatprep.subr.mxu0 %v607
        %624 = vmatpush1.msra.mxu0 %v606
        %625 = vmatprep.subr.mxu0 %v609
        %626 = vmatpush1.msra.mxu0 %v608
        %627 = vmatprep.subr.mxu0 %v611
        %628 = vmatpush1.msra.mxu0 %v610
        %629 = vmatprep.subr.mxu0 0.0
        %630 = vmatpush1.msra.mxu0 0.0
        %631 = vmatprep.subr.mxu0 0.0
        %632 = vmatpush1.msra.mxu0 0.0
        %633 = vmatprep.subr.mxu0 0.0
        %634 = vmatpush1.msra.mxu0 0.0
        %635 = vmatprep.subr.mxu0 0.0
        %636 = vmatpush1.msra.mxu0 0.0
        %637 = vmatprep.subr.mxu0 0.0
        %638 = vmatpush1.msra.mxu0 0.0
        %639 = vmatprep.subr.mxu0 0.0
        %640 = vmatpush1.msra.mxu0 0.0
        %641 = vmatprep.subr.mxu0 0.0
        %642 = vmatpush1.msra.mxu0 0.0
        %643 = vmatprep.subr.mxu0 0.0
        %644 = vmatpush1.msra.mxu0 0.0
        %645 = vmatprep.subr.mxu0 0.0
        %646 = vmatpush1.msra.mxu0 0.0
        %647 = vmatprep.subr.mxu0 0.0
        %648 = vmatpush1.msra.mxu0 0.0
        %649 = vmatprep.subr.mxu0 0.0
        %650 = vmatpush1.msra.mxu0 0.0
        %651 = vmatprep.subr.mxu0 0.0
        %652 = vmatpush1.msra.mxu0 0.0
        %653 = vmatprep.subr.mxu0 0.0
        %654 = vmatpush1.msra.mxu0 0.0
        %655 = vmatprep.subr.mxu0 0.0
        %656 = vmatpush1.msra.mxu0 0.0
        %657 = vmatprep.subr.mxu0 0.0
        %658 = vmatpush1.msra.mxu0 0.0
        %659 = vmatprep.subr.mxu0 0.0
        %660 = vmatpush1.msra.mxu0 0.0
        %661 = vmatprep.subr.mxu0 0.0
        %662 = vmatpush1.msra.mxu0 0.0
        %663 = vmatprep.subr.mxu0 0.0
        %664 = vmatpush1.msra.mxu0 0.0
        %665 = vmatprep.subr.mxu0 0.0
        %666 = vmatpush1.msra.mxu0 0.0
        %667 = vmatprep.subr.mxu0 0.0
        %668 = vmatpush1.msra.mxu0 0.0
        %669 = vmatprep.subr.mxu0 0.0
        %670 = vmatpush1.msra.mxu0 0.0
        %671 = vmatprep.subr.mxu0 0.0
        %672 = vmatpush1.msra.mxu0 0.0
        %673 = vmatprep.subr.mxu0 0.0
        %674 = vmatpush1.msra.mxu0 0.0
        %675 = vmatprep.subr.mxu0 0.0
        %676 = vmatpush1.msra.mxu0 0.0
        %677 = vmatprep.subr.mxu0 0.0
        %678 = vmatpush1.msra.mxu0 0.0
        %679 = vmatprep.subr.mxu0 0.0
        %680 = vmatpush1.msra.mxu0 0.0
        %681 = vmatprep.subr.mxu0 0.0
        %682 = vmatpush1.msra.mxu0 0.0
        %683 = vmatprep.subr.mxu0 0.0
        %684 = vmatpush1.msra.mxu0 0.0
        %685 = vmatprep.subr.mxu0 0.0
        %686 = vmatpush1.msra.mxu0 0.0
        %687 = vmatprep.mubr.f32.mxu0 0.0
        %688 = vmatmul.mubr.f32.gmra.mrb[0].mxu0 %v621
        %v689 = vpop.f32.mrb[0].mxu0
        %v690 = vadd.f32 0.0, %v689
        %v691 = vpop.f32.mrb[0].mxu0
        %v692 = vadd.f32 0.0, %v691
        %693 = vdwg.mxu0
        %vm694 = vcmask 31744
        %v696 = vsel %vm694, %v612, 0
        %v699 = vsel %vm694, %v613, 0
        %v702 = vsel %vm694, %v614, 0
        %vm704 = vcmask 1043456
        %v706 = vsel %vm704, %v690, 0
        %v709 = vsel %vm704, %v692, 0
        %711 = vmatprep.subr.mxu0 %v709
        %712 = vmatpush1.msra.mxu0 %v706
        %713 = vmatprep.subr.mxu0 0.0
        %714 = vmatpush1.msra.mxu0 0.0
        %715 = vmatprep.subr.mxu0 0.0
        %716 = vmatpush1.msra.mxu0 0.0
        %717 = vmatprep.subr.mxu0 0.0
        %718 = vmatpush1.msra.mxu0 0.0
        %719 = vmatprep.subr.mxu0 0.0
        %720 = vmatpush1.msra.mxu0 0.0
        %721 = vmatprep.subr.mxu0 0.0
        %722 = vmatpush1.msra.mxu0 0.0
        %723 = vmatprep.subr.mxu0 0.0
        %724 = vmatpush1.msra.mxu0 0.0
        %725 = vmatprep.subr.mxu0 0.0
        %726 = vmatpush1.msra.mxu0 0.0
        %727 = vmatprep.subr.mxu0 0.0
        %728 = vmatpush1.msra.mxu0 0.0
        %729 = vmatprep.subr.mxu0 0.0
        %730 = vmatpush1.msra.mxu0 0.0
        %731 = vmatprep.subr.mxu0 0.0
        %732 = vmatpush1.msra.mxu0 0.0
        %733 = vmatprep.subr.mxu0 0.0
        %734 = vmatpush1.msra.mxu0 0.0
        %735 = vmatprep.subr.mxu0 0.0
        %736 = vmatpush1.msra.mxu0 0.0
        %737 = vmatprep.subr.mxu0 0.0
        %738 = vmatpush1.msra.mxu0 0.0
        %739 = vmatprep.subr.mxu0 0.0
        %740 = vmatpush1.msra.mxu0 0.0
        %741 = vmatprep.subr.mxu0 0.0
        %742 = vmatpush1.msra.mxu0 0.0
        %743 = vmatprep.subr.mxu0 0.0
        %744 = vmatpush1.msra.mxu0 0.0
        %745 = vmatprep.subr.mxu0 0.0
        %746 = vmatpush1.msra.mxu0 0.0
        %747 = vmatprep.subr.mxu0 0.0
        %748 = vmatpush1.msra.mxu0 0.0
        %749 = vmatprep.subr.mxu0 0.0
        %750 = vmatpush1.msra.mxu0 0.0
        %751 = vmatprep.subr.mxu0 0.0
        %752 = vmatpush1.msra.mxu0 0.0
        %753 = vmatprep.subr.mxu0 0.0
        %754 = vmatpush1.msra.mxu0 0.0
        %755 = vmatprep.subr.mxu0 0.0
        %756 = vmatpush1.msra.mxu0 0.0
        %757 = vmatprep.subr.mxu0 0.0
        %758 = vmatpush1.msra.mxu0 0.0
        %759 = vmatprep.subr.mxu0 0.0
        %760 = vmatpush1.msra.mxu0 0.0
        %761 = vmatprep.subr.mxu0 0.0
        %762 = vmatpush1.msra.mxu0 0.0
        %763 = vmatprep.subr.mxu0 0.0
        %764 = vmatpush1.msra.mxu0 0.0
        %765 = vmatprep.subr.mxu0 0.0
        %766 = vmatpush1.msra.mxu0 0.0
        %767 = vmatprep.subr.mxu0 0.0
        %768 = vmatpush1.msra.mxu0 0.0
        %769 = vmatprep.subr.mxu0 0.0
        %770 = vmatpush1.msra.mxu0 0.0
        %771 = vmatprep.subr.mxu0 0.0
        %772 = vmatpush1.msra.mxu0 0.0
        %773 = vmatprep.subr.mxu0 0.0
        %774 = vmatpush1.msra.mxu0 0.0
        %775 = vmatprep.mubr.f32.mxu0 0.0
        %776 = vmatmul.mubr.f32.gmra.mrb[0].mxu0 %v696
        %v777 = vpop.f32.mrb[0].mxu0
        %v778 = vadd.f32 0.0, %v777
        %v779 = vpop.f32.mrb[0].mxu0
        %v780 = vadd.f32 0.0, %v779
        %781 = vmatprep.mubr.f32.mxu0 0.0
        %782 = vmatmul.mubr.f32.gmra.mrb[0].mxu0 %v699
        %v783 = vpop.f32.mrb[0].mxu0
        %v784 = vadd.f32 0.0, %v783
        %v785 = vpop.f32.mrb[0].mxu0
        %v786 = vadd.f32 0.0, %v785
        %787 = vmatprep.mubr.f32.mxu0 0.0
        %788 = vmatmul.mubr.f32.gmra.mrb[0].mxu0 %v702
        %v789 = vpop.f32.mrb[0].mxu0
        %v790 = vadd.f32 0.0, %v789
        %v791 = vpop.f32.mrb[0].mxu0
        %v792 = vadd.f32 0.0, %v791
        %793 = vdwg.mxu0
        %v794 = vsub.f32 %v606, %v778
        %v795 = vsub.f32 %v607, %v780
        %v796 = vsub.f32 %v608, %v784
        %v797 = vsub.f32 %v609, %v786
        %v798 = vsub.f32 %v610, %v790
        %v799 = vsub.f32 %v611, %v792
        %v800 = vmul.f32 %v794, %v794
        %v801 = vmul.f32 %v795, %v795
        %v802 = vmul.f32 %v796, %v796
        %v803 = vmul.f32 %v797, %v797
        %v804 = vmul.f32 %v798, %v798
        %v805 = vmul.f32 %v799, %v799
        %806 = vmatprep.subr.mxu0 %v801
        %807 = vmatpush1.msra.mxu0 %v800
        %808 = vmatprep.subr.mxu0 %v803
        %809 = vmatpush1.msra.mxu0 %v802
        %810 = vmatprep.subr.mxu0 %v805
        %811 = vmatpush1.msra.mxu0 %v804
        %812 = vmatprep.subr.mxu0 0.0
        %813 = vmatpush1.msra.mxu0 0.0
        %814 = vmatprep.subr.mxu0 0.0
        %815 = vmatpush1.msra.mxu0 0.0
        %816 = vmatprep.subr.mxu0 0.0
        %817 = vmatpush1.msra.mxu0 0.0
        %818 = vmatprep.subr.mxu0 0.0
        %819 = vmatpush1.msra.mxu0 0.0
        %820 = vmatprep.subr.mxu0 0.0
        %821 = vmatpush1.msra.mxu0 0.0
        %822 = vmatprep.subr.mxu0 0.0
        %823 = vmatpush1.msra.mxu0 0.0
        %824 = vmatprep.subr.mxu0 0.0
        %825 = vmatpush1.msra.mxu0 0.0
        %826 = vmatprep.subr.mxu0 0.0
        %827 = vmatpush1.msra.mxu0 0.0
        %828 = vmatprep.subr.mxu0 0.0
        %829 = vmatpush1.msra.mxu0 0.0
        %830 = vmatprep.subr.mxu0 0.0
        %831 = vmatpush1.msra.mxu0 0.0
        %832 = vmatprep.subr.mxu0 0.0
        %833 = vmatpush1.msra.mxu0 0.0
        %834 = vmatprep.subr.mxu0 0.0
        %835 = vmatpush1.msra.mxu0 0.0
        %836 = vmatprep.subr.mxu0 0.0
        %837 = vmatpush1.msra.mxu0 0.0
        %838 = vmatprep.subr.mxu0 0.0
        %839 = vmatpush1.msra.mxu0 0.0
        %840 = vmatprep.subr.mxu0 0.0
        %841 = vmatpush1.msra.mxu0 0.0
        %842 = vmatprep.subr.mxu0 0.0
        %843 = vmatpush1.msra.mxu0 0.0
        %844 = vmatprep.subr.mxu0 0.0
        %845 = vmatpush1.msra.mxu0 0.0
        %846 = vmatprep.subr.mxu0 0.0
        %847 = vmatpush1.msra.mxu0 0.0
        %848 = vmatprep.subr.mxu0 0.0
        %849 = vmatpush1.msra.mxu0 0.0
        %850 = vmatprep.subr.mxu0 0.0
        %851 = vmatpush1.msra.mxu0 0.0
        %852 = vmatprep.subr.mxu0 0.0
        %853 = vmatpush1.msra.mxu0 0.0
        %854 = vmatprep.subr.mxu0 0.0
        %855 = vmatpush1.msra.mxu0 0.0
        %856 = vmatprep.subr.mxu0 0.0
        %857 = vmatpush1.msra.mxu0 0.0
        %858 = vmatprep.subr.mxu0 0.0
        %859 = vmatpush1.msra.mxu0 0.0
        %860 = vmatprep.subr.mxu0 0.0
        %861 = vmatpush1.msra.mxu0 0.0
        %862 = vmatprep.subr.mxu0 0.0
        %863 = vmatpush1.msra.mxu0 0.0
        %864 = vmatprep.subr.mxu0 0.0
        %865 = vmatpush1.msra.mxu0 0.0
        %866 = vmatprep.subr.mxu0 0.0
        %867 = vmatpush1.msra.mxu0 0.0
        %868 = vmatprep.subr.mxu0 0.0
        %869 = vmatpush1.msra.mxu0 0.0
        %870 = vmatprep.mubr.f32.mxu0 0.0
        %871 = vmatmul.mubr.f32.gmra.mrb[0].mxu0 %v621
        %v872 = vpop.f32.mrb[0].mxu0
        %v873 = vadd.f32 1e-05, %v872
        %v874 = vpop.f32.mrb[0].mxu0
        %v875 = vadd.f32 1e-05, %v874
        %876 = vdwg.mxu0
        %v877 = vrsqrt.pop %v873
        %v878 = vrsqrt.pop %v875
        %880 = vset.pattern.permute.xlu0 0
        %881 = vperm.xlu0 %880, %v616
        %v882 = vpop.permute.xlu0 %881
        %885 = vset.pattern.permute.xlu0 0
        %886 = vperm.xlu0 %885, %v617
        %v887 = vpop.permute.xlu0 %886
        %890 = vset.pattern.permute.xlu0 0
        %891 = vperm.xlu0 %890, %v618
        %v892 = vpop.permute.xlu0 %891
        %v895 = vsel %vm704, %v877, 0
        %v898 = vsel %vm704, %v878, 0
        %900 = vmatprep.subr.mxu0 %v898
        %901 = vmatpush1.msra.mxu0 %v895
        %902 = vmatprep.subr.mxu0 0.0
        %903 = vmatpush1.msra.mxu0 0.0
        %904 = vmatprep.subr.mxu0 0.0
        %905 = vmatpush1.msra.mxu0 0.0
        %906 = vmatprep.subr.mxu0 0.0
        %907 = vmatpush1.msra.mxu0 0.0
        %908 = vmatprep.subr.mxu0 0.0
        %909 = vmatpush1.msra.mxu0 0.0
        %910 = vmatprep.subr.mxu0 0.0
        %911 = vmatpush1.msra.mxu0 0.0
        %912 = vmatprep.subr.mxu0 0.0
        %913 = vmatpush1.msra.mxu0 0.0
        %914 = vmatprep.subr.mxu0 0.0
        %915 = vmatpush1.msra.mxu0 0.0
        %916 = vmatprep.subr.mxu0 0.0
        %917 = vmatpush1.msra.mxu0 0.0
        %918 = vmatprep.subr.mxu0 0.0
        %919 = vmatpush1.msra.mxu0 0.0
        %920 = vmatprep.subr.mxu0 0.0
        %921 = vmatpush1.msra.mxu0 0.0
        %922 = vmatprep.subr.mxu0 0.0
        %923 = vmatpush1.msra.mxu0 0.0
        %924 = vmatprep.subr.mxu0 0.0
        %925 = vmatpush1.msra.mxu0 0.0
        %926 = vmatprep.subr.mxu0 0.0
        %927 = vmatpush1.msra.mxu0 0.0
        %928 = vmatprep.subr.mxu0 0.0
        %929 = vmatpush1.msra.mxu0 0.0
        %930 = vmatprep.subr.mxu0 0.0
        %931 = vmatpush1.msra.mxu0 0.0
        %932 = vmatprep.subr.mxu0 0.0
        %933 = vmatpush1.msra.mxu0 0.0
        %934 = vmatprep.subr.mxu0 0.0
        %935 = vmatpush1.msra.mxu0 0.0
        %936 = vmatprep.subr.mxu0 0.0
        %937 = vmatpush1.msra.mxu0 0.0
        %938 = vmatprep.subr.mxu0 0.0
        %939 = vmatpush1.msra.mxu0 0.0
        %940 = vmatprep.subr.mxu0 0.0
        %941 = vmatpush1.msra.mxu0 0.0
        %942 = vmatprep.subr.mxu0 0.0
        %943 = vmatpush1.msra.mxu0 0.0
        %944 = vmatprep.subr.mxu0 0.0
        %945 = vmatpush1.msra.mxu0 0.0
        %946 = vmatprep.subr.mxu0 0.0
        %947 = vmatpush1.msra.mxu0 0.0
        %948 = vmatprep.subr.mxu0 0.0
        %949 = vmatpush1.msra.mxu0 0.0
        %950 = vmatprep.subr.mxu0 0.0
        %951 = vmatpush1.msra.mxu0 0.0
        %952 = vmatprep.subr.mxu0 0.0
        %953 = vmatpush1.msra.mxu0 0.0
        %954 = vmatprep.subr.mxu0 0.0
        %955 = vmatpush1.msra.mxu0 0.0
        %956 = vmatprep.subr.mxu0 0.0
        %957 = vmatpush1.msra.mxu0 0.0
        %958 = vmatprep.subr.mxu0 0.0
        %959 = vmatpush1.msra.mxu0 0.0
        %960 = vmatprep.subr.mxu0 0.0
        %961 = vmatpush1.msra.mxu0 0.0
        %962 = vmatprep.subr.mxu0 0.0
        %963 = vmatpush1.msra.mxu0 0.0
        %964 = vmatprep.mubr.f32.mxu0 0.0
        %965 = vmatmul.mubr.f32.gmra.mrb[0].mxu0 %v696
        %v966 = vpop.f32.mrb[0].mxu0
        %v967 = vadd.f32 %v882, %v966
        %v968 = vpop.f32.mrb[0].mxu0
        %v969 = vadd.f32 %v882, %v968
        %970 = vmatprep.mubr.f32.mxu0 0.0
        %971 = vmatmul.mubr.f32.gmra.mrb[0].mxu0 %v699
        %v972 = vpop.f32.mrb[0].mxu0
        %v973 = vadd.f32 %v887, %v972
        %v974 = vpop.f32.mrb[0].mxu0
        %v975 = vadd.f32 %v887, %v974
        %976 = vmatprep.mubr.f32.mxu0 0.0
        %977 = vmatmul.mubr.f32.gmra.mrb[0].mxu0 %v702
        %v978 = vpop.f32.mrb[0].mxu0
        %v979 = vadd.f32 %v892, %v978
        %v980 = vpop.f32.mrb[0].mxu0
        %v981 = vadd.f32 %v892, %v980
        %982 = vdwg.mxu0
        %v983 = vmul.f32 %v794, %v967
        %v984 = vmul.f32 %v795, %v969
        %v985 = vmul.f32 %v796, %v973
        %v986 = vmul.f32 %v797, %v975
        %v987 = vmul.f32 %v798, %v979
        %v988 = vmul.f32 %v799, %v981
        %v989 = vld [vmem:[%s4] sm:$0xff]
        %v990 = vld [vmem:[%s4 + $0x8] sm:$0xff]
        %v991 = vld [vmem:[%s4 + $0x10] sm:$0xff]
        %v992 = vld [vmem:[%s4 + $0x18] sm:$0xff]
        %v993 = vld [vmem:[%s4 + $0x20] sm:$0xff]
        %v994 = vld [vmem:[%s4 + $0x28] sm:$0xff]
        %v995 = vld [vmem:[%s5] sm:$0xff]
        %v996 = vld [vmem:[%s5 + $0x8] sm:$0xff]
        %v997 = vld [vmem:[%s5 + $0x10] sm:$0xff]
        %v998 = vld [vmem:[%s5 + $0x18] sm:$0xff]
        %v999 = vld [vmem:[%s5 + $0x20] sm:$0xff]
        %v1000 = vld [vmem:[%s5 + $0x28] sm:$0xff]
        %1002 = vset.pattern.permute.xlu0 0
        %1003 = vperm.xlu0 %1002, %v995
        %v1004 = vpop.permute.xlu0 %1003
        %1007 = vset.pattern.permute.xlu0 0
        %1008 = vperm.xlu0 %1007, %v996
        %v1009 = vpop.permute.xlu0 %1008
        %1012 = vset.pattern.permute.xlu0 0
        %1013 = vperm.xlu0 %1012, %v997
        %v1014 = vpop.permute.xlu0 %1013
        %1017 = vset.pattern.permute.xlu0 0
        %1018 = vperm.xlu0 %1017, %v998
        %v1019 = vpop.permute.xlu0 %1018
        %1022 = vset.pattern.permute.xlu0 0
        %1023 = vperm.xlu0 %1022, %v999
        %v1024 = vpop.permute.xlu0 %1023
        %1027 = vset.pattern.permute.xlu0 0
        %1028 = vperm.xlu0 %1027, %v1000
        %v1029 = vpop.permute.xlu0 %1028
        %v1032 = vsel %vm619, %v989, 0
        %v1035 = vsel %vm619, %v990, 0
        %v1038 = vsel %vm619, %v991, 0
        %v1041 = vsel %vm619, %v992, 0
        %v1044 = vsel %vm619, %v993, 0
        %v1047 = vsel %vm619, %v994, 0
        %1049 = vmatprep.subr.mxu0 %v984
        %1050 = vmatpush1.msra.mxu0 %v983
        %1051 = vmatprep.subr.mxu0 %v986
        %1052 = vmatpush1.msra.mxu0 %v985
        %1053 = vmatprep.subr.mxu0 %v988
        %1054 = vmatpush1.msra.mxu0 %v987
        %1055 = vmatprep.subr.mxu0 0.0
        %1056 = vmatpush1.msra.mxu0 0.0
        %1057 = vmatprep.subr.mxu0 0.0
        %1058 = vmatpush1.msra.mxu0 0.0
        %1059 = vmatprep.subr.mxu0 0.0
        %1060 = vmatpush1.msra.mxu0 0.0
        %1061 = vmatprep.subr.mxu0 0.0
        %1062 = vmatpush1.msra.mxu0 0.0
        %1063 = vmatprep.subr.mxu0 0.0
        %1064 = vmatpush1.msra.mxu0 0.0
        %1065 = vmatprep.subr.mxu0 0.0
        %1066 = vmatpush1.msra.mxu0 0.0
        %1067 = vmatprep.subr.mxu0 0.0
        %1068 = vmatpush1.msra.mxu0 0.0
        %1069 = vmatprep.subr.mxu0 0.0
        %1070 = vmatpush1.msra.mxu0 0.0
        %1071 = vmatprep.subr.mxu0 0.0
        %1072 = vmatpush1.msra.mxu0 0.0
        %1073 = vmatprep.subr.mxu0 0.0
        %1074 = vmatpush1.msra.mxu0 0.0
        %1075 = vmatprep.subr.mxu0 0.0
        %1076 = vmatpush1.msra.mxu0 0.0
        %1077 = vmatprep.subr.mxu0 0.0
        %1078 = vmatpush1.msra.mxu0 0.0
        %1079 = vmatprep.subr.mxu0 0.0
        %1080 = vmatpush1.msra.mxu0 0.0
        %1081 = vmatprep.subr.mxu0 0.0
        %1082 = vmatpush1.msra.mxu0 0.0
        %1083 = vmatprep.subr.mxu0 0.0
        %1084 = vmatpush1.msra.mxu0 0.0
        %1085 = vmatprep.subr.mxu0 0.0
        %1086 = vmatpush1.msra.mxu0 0.0
        %1087 = vmatprep.subr.mxu0 0.0
        %1088 = vmatpush1.msra.mxu0 0.0
        %1089 = vmatprep.subr.mxu0 0.0
        %1090 = vmatpush1.msra.mxu0 0.0
        %1091 = vmatprep.subr.mxu0 0.0
        %1092 = vmatpush1.msra.mxu0 0.0
        %1093 = vmatprep.subr.mxu0 0.0
        %1094 = vmatpush1.msra.mxu0 0.0
        %1095 = vmatprep.subr.mxu0 0.0
        %1096 = vmatpush1.msra.mxu0 0.0
        %1097 = vmatprep.subr.mxu0 0.0
        %1098 = vmatpush1.msra.mxu0 0.0
        %1099 = vmatprep.subr.mxu0 0.0
        %1100 = vmatpush1.msra.mxu0 0.0
        %1101 = vmatprep.subr.mxu0 0.0
        %1102 = vmatpush1.msra.mxu0 0.0
        %1103 = vmatprep.subr.mxu0 0.0
        %1104 = vmatpush1.msra.mxu0 0.0
        %1105 = vmatprep.subr.mxu0 0.0
        %1106 = vmatpush1.msra.mxu0 0.0
        %1107 = vmatprep.subr.mxu0 0.0
        %1108 = vmatpush1.msra.mxu0 0.0
        %1109 = vmatprep.subr.mxu0 0.0
        %1110 = vmatpush1.msra.mxu0 0.0
        %1111 = vmatprep.subr.mxu0 0.0
        %1112 = vmatpush1.msra.mxu0 0.0
        %1113 = vmatprep.mubr.f32.mxu0 0.0
        %1114 = vmatmul.mubr.f32.gmra.mrb[0].mxu0 %v1032
        %v1115 = vpop.f32.mrb[0].mxu0
        %v1116 = vadd.f32 %v1004, %v1115
        %v1117 = vpop.f32.mrb[0].mxu0
        %v1118 = vadd.f32 %v1004, %v1117
        %1119 = vmatprep.mubr.f32.mxu0 0.0
        %1120 = vmatmul.mubr.f32.gmra.mrb[0].mxu0 %v1035
        %v1121 = vpop.f32.mrb[0].mxu0
        %v1122 = vadd.f32 %v1009, %v1121
        %v1123 = vpop.f32.mrb[0].mxu0
        %v1124 = vadd.f32 %v1009, %v1123
        %1125 = vmatprep.mubr.f32.mxu0 0.0
        %1126 = vmatmul.mubr.f32.gmra.mrb[0].mxu0 %v1038
        %v1127 = vpop.f32.mrb[0].mxu0
        %v1128 = vadd.f32 %v1014, %v1127
        %v1129 = vpop.f32.mrb[0].mxu0
        %v1130 = vadd.f32 %v1014, %v1129
        %1131 = vmatprep.mubr.f32.mxu0 0.0
        %1132 = vmatmul.mubr.f32.gmra.mrb[0].mxu0 %v1041
        %v1133 = vpop.f32.mrb[0].mxu0
        %v1134 = vadd.f32 %v1019, %v1133
        %v1135 = vpop.f32.mrb[0].mxu0
        %v1136 = vadd.f32 %v1019, %v1135
        %1137 = vmatprep.mubr.f32.mxu0 0.0
        %1138 = vmatmul.mubr.f32.gmra.mrb[0].mxu0 %v1044
        %v1139 = vpop.f32.mrb[0].mxu0
        %v1140 = vadd.f32 %v1024, %v1139
        %v1141 = vpop.f32.mrb[0].mxu0
        %v1142 = vadd.f32 %v1024, %v1141
        %1143 = vmatprep.mubr.f32.mxu0 0.0
        %1144 = vmatmul.mubr.f32.gmra.mrb[0].mxu0 %v1047
        %v1145 = vpop.f32.mrb[0].mxu0
        %v1146 = vadd.f32 %v1029, %v1145
        %v1147 = vpop.f32.mrb[0].mxu0
        %v1148 = vadd.f32 %v1029, %v1147
        %1149 = vdwg.mxu0
        %v1150 = vtanh.pop %v1116
        %v1151 = vtanh.pop %v1118
        %v1152 = vtanh.pop %v1122
        %v1153 = vtanh.pop %v1124
        %v1154 = vtanh.pop %v1128
        %v1155 = vtanh.pop %v1130
        %v1156 = vtanh.pop %v1134
        %v1157 = vtanh.pop %v1136
        %v1158 = vtanh.pop %v1140
        %v1159 = vtanh.pop %v1142
        %v1160 = vtanh.pop %v1146
        %v1161 = vtanh.pop %v1148
        %v1162 = vld [vmem:[%s6] sm:$0xff]
        %v1163 = vld [vmem:[%s6 + $0x8] sm:$0xff]
        %v1164 = vld [vmem:[%s6 + $0x10] sm:$0xff]
        %v1165 = vld [vmem:[%s6 + $0x18] sm:$0xff]
        %v1166 = vld [vmem:[%s6 + $0x20] sm:$0xf]
        %v1167 = vld [vmem:[%s7] sm:$0xff]
        %v1168 = vld [vmem:[%s7 + $0x8] sm:$0xff]
        %v1169 = vld [vmem:[%s7 + $0x10] sm:$0xff]
        %v1170 = vld [vmem:[%s7 + $0x18] sm:$0xff]
        %v1171 = vld [vmem:[%s7 + $0x20] sm:$0xf]
        %1173 = vset.pattern.permute.xlu0 0
        %1174 = vperm.xlu0 %1173, %v1167
        %v1175 = vpop.permute.xlu0 %1174
        %1178 = vset.pattern.permute.xlu0 0
        %1179 = vperm.xlu0 %1178, %v1168
        %v1180 = vpop.permute.xlu0 %1179
        %1183 = vset.pattern.permute.xlu0 0
        %1184 = vperm.xlu0 %1183, %v1169
        %v1185 = vpop.permute.xlu0 %1184
        %1188 = vset.pattern.permute.xlu0 0
        %1189 = vperm.xlu0 %1188, %v1170
        %v1190 = vpop.permute.xlu0 %1189
        %1193 = vset.pattern.permute.xlu0 0
        %1194 = vperm.xlu0 %1193, %v1171
        %v1195 = vpop.permute.xlu0 %1194
        %vm1197 = vcmask 392192
        %v1199 = vsel %vm1197, %v1162, 0
        %v1202 = vsel %vm1197, %v1163, 0
        %v1205 = vsel %vm1197, %v1164, 0
        %v1208 = vsel %vm1197, %v1165, 0
        %v1211 = vsel %vm1197, %v1166, 0
        %1213 = vmatprep.subr.mxu0 %v1151
        %1214 = vmatpush1.msra.mxu0 %v1150
        %1215 = vmatprep.subr.mxu0 %v1153
        %1216 = vmatpush1.msra.mxu0 %v1152
        %1217 = vmatprep.subr.mxu0 %v1155
        %1218 = vmatpush1.msra.mxu0 %v1154
        %1219 = vmatprep.subr.mxu0 %v1157
        %1220 = vmatpush1.msra.mxu0 %v1156
        %1221 = vmatprep.subr.mxu0 %v1159
        %1222 = vmatpush1.msra.mxu0 %v1158
        %1223 = vmatprep.subr.mxu0 %v1161
        %1224 = vmatpush1.msra.mxu0 %v1160
        %1225 = vmatprep.subr.mxu0 0.0
        %1226 = vmatpush1.msra.mxu0 0.0
        %1227 = vmatprep.subr.mxu0 0.0
        %1228 = vmatpush1.msra.mxu0 0.0
        %1229 = vmatprep.subr.mxu0 0.0
        %1230 = vmatpush1.msra.mxu0 0.0
        %1231 = vmatprep.subr.mxu0 0.0
        %1232 = vmatpush1.msra.mxu0 0.0
        %1233 = vmatprep.subr.mxu0 0.0
        %1234 = vmatpush1.msra.mxu0 0.0
        %1235 = vmatprep.subr.mxu0 0.0
        %1236 = vmatpush1.msra.mxu0 0.0
        %1237 = vmatprep.subr.mxu0 0.0
        %1238 = vmatpush1.msra.mxu0 0.0
        %1239 = vmatprep.subr.mxu0 0.0
        %1240 = vmatpush1.msra.mxu0 0.0
        %1241 = vmatprep.subr.mxu0 0.0
        %1242 = vmatpush1.msra.mxu0 0.0
        %1243 = vmatprep.subr.mxu0 0.0
        %1244 = vmatpush1.msra.mxu0 0.0
        %1245 = vmatprep.subr.mxu0 0.0
        %1246 = vmatpush1.msra.mxu0 0.0
        %1247 = vmatprep.subr.mxu0 0.0
        %1248 = vmatpush1.msra.mxu0 0.0
        %1249 = vmatprep.subr.mxu0 0.0
        %1250 = vmatpush1.msra.mxu0 0.0
        %1251 = vmatprep.subr.mxu0 0.0
        %1252 = vmatpush1.msra.mxu0 0.0
        %1253 = vmatprep.subr.mxu0 0.0
        %1254 = vmatpush1.msra.mxu0 0.0
        %1255 = vmatprep.subr.mxu0 0.0
        %1256 = vmatpush1.msra.mxu0 0.0
        %1257 = vmatprep.subr.mxu0 0.0
        %1258 = vmatpush1.msra.mxu0 0.0
        %1259 = vmatprep.subr.mxu0 0.0
        %1260 = vmatpush1.msra.mxu0 0.0
        %1261 = vmatprep.subr.mxu0 0.0
        %1262 = vmatpush1.msra.mxu0 0.0
        %1263 = vmatprep.subr.mxu0 0.0
        %1264 = vmatpush1.msra.mxu0 0.0
        %1265 = vmatprep.subr.mxu0 0.0
        %1266 = vmatpush1.msra.mxu0 0.0
        %1267 = vmatprep.subr.mxu0 0.0
        %1268 = vmatpush1.msra.mxu0 0.0
        %1269 = vmatprep.subr.mxu0 0.0
        %1270 = vmatpush1.msra.mxu0 0.0
        %1271 = vmatprep.subr.mxu0 0.0
        %1272 = vmatpush1.msra.mxu0 0.0
        %1273 = vmatprep.subr.mxu0 0.0
        %1274 = vmatpush1.msra.mxu0 0.0
        %1275 = vmatprep.subr.mxu0 0.0
        %1276 = vmatpush1.msra.mxu0 0.0
        %1277 = vmatprep.mubr.f32.mxu0 0.0
        %1278 = vmatmul.mubr.f32.gmra.mrb[0].mxu0 %v1199
        %v1279 = vpop.f32.mrb[0].mxu0
        %v1280 = vadd.f32 %v1175, %v1279
        %v1281 = vpop.f32.mrb[0].mxu0
        %v1282 = vadd.f32 %v1175, %v1281
        %1283 = vmatprep.mubr.f32.mxu0 0.0
        %1284 = vmatmul.mubr.f32.gmra.mrb[0].mxu0 %v1202
        %v1285 = vpop.f32.mrb[0].mxu0
        %v1286 = vadd.f32 %v1180, %v1285
        %v1287 = vpop.f32.mrb[0].mxu0
        %v1288 = vadd.f32 %v1180, %v1287
        %1289 = vmatprep.mubr.f32.mxu0 0.0
        %1290 = vmatmul.mubr.f32.gmra.mrb[0].mxu0 %v1205
        %v1291 = vpop.f32.mrb[0].mxu0
        %v1292 = vadd.f32 %v1185, %v1291
        %v1293 = vpop.f32.mrb[0].mxu0
        %v1294 = vadd.f32 %v1185, %v1293
        %1295 = vmatprep.mubr.f32.mxu0 0.0
        %1296 = vmatmul.mubr.f32.gmra.mrb[0].mxu0 %v1208
        %v1297 = vpop.f32.mrb[0].mxu0
        %v1298 = vadd.f32 %v1190, %v1297
        %v1299 = vpop.f32.mrb[0].mxu0
        %v1300 = vadd.f32 %v1190, %v1299
        %1301 = vmatprep.mubr.f32.mxu0 0.0
        %1302 = vmatmul.mubr.f32.gmra.mrb[0].mxu0 %v1211
        %v1303 = vpop.f32.mrb[0].mxu0
        %v1304 = vadd.f32 %v1195, %v1303
        %v1305 = vpop.f32.mrb[0].mxu0
        %v1306 = vadd.f32 %v1195, %v1305
        %1307 = vdwg.mxu0
        %v1308 = vtanh.pop %v1280
        %v1309 = vtanh.pop %v1282
        %v1310 = vtanh.pop %v1286
        %v1311 = vtanh.pop %v1288
        %v1312 = vtanh.pop %v1292
        %v1313 = vtanh.pop %v1294
        %v1314 = vtanh.pop %v1298
        %v1315 = vtanh.pop %v1300
        %v1316 = vtanh.pop %v1304
        %v1317 = vtanh.pop %v1306
        %v1318 = vld [vmem:[%s8] sm:$0xff]
        %v1319 = vld [vmem:[%s8 + $0x8] sm:$0xff]
        %v1320 = vld [vmem:[%s8 + $0x10] sm:$0xff]
        %v1321 = vld [vmem:[%s8 + $0x18] sm:$0xff]
        %v1322 = vld [vmem:[%s8 + $0x20] sm:$0xf]
        %v1323 = vld [vmem:[%s9] sm:$0xff]
        %v1324 = vld [vmem:[%s9 + $0x8] sm:$0xff]
        %v1325 = vld [vmem:[%s9 + $0x10] sm:$0xff]
        %v1326 = vld [vmem:[%s9 + $0x18] sm:$0xff]
        %v1327 = vld [vmem:[%s9 + $0x20] sm:$0xf]
        %1329 = vset.pattern.permute.xlu0 0
        %1330 = vperm.xlu0 %1329, %v1323
        %v1331 = vpop.permute.xlu0 %1330
        %1334 = vset.pattern.permute.xlu0 0
        %1335 = vperm.xlu0 %1334, %v1324
        %v1336 = vpop.permute.xlu0 %1335
        %1339 = vset.pattern.permute.xlu0 0
        %1340 = vperm.xlu0 %1339, %v1325
        %v1341 = vpop.permute.xlu0 %1340
        %1344 = vset.pattern.permute.xlu0 0
        %1345 = vperm.xlu0 %1344, %v1326
        %v1346 = vpop.permute.xlu0 %1345
        %1349 = vset.pattern.permute.xlu0 0
        %1350 = vperm.xlu0 %1349, %v1327
        %v1351 = vpop.permute.xlu0 %1350
        %vm1353 = vcmask 293888
        %v1355 = vsel %vm1353, %v1318, 0
        %v1358 = vsel %vm1353, %v1319, 0
        %v1361 = vsel %vm1353, %v1320, 0
        %v1364 = vsel %vm1353, %v1321, 0
        %v1367 = vsel %vm1353, %v1322, 0
        %v1370 = vsel %vm704, %v1316, 0
        %v1373 = vsel %vm704, %v1317, 0
        %1375 = vmatprep.subr.mxu0 %v1309
        %1376 = vmatpush1.msra.mxu0 %v1308
        %1377 = vmatprep.subr.mxu0 %v1311
        %1378 = vmatpush1.msra.mxu0 %v1310
        %1379 = vmatprep.subr.mxu0 %v1313
        %1380 = vmatpush1.msra.mxu0 %v1312
        %1381 = vmatprep.subr.mxu0 %v1315
        %1382 = vmatpush1.msra.mxu0 %v1314
        %1383 = vmatprep.subr.mxu0 %v1373
        %1384 = vmatpush1.msra.mxu0 %v1370
        %1385 = vmatprep.subr.mxu0 0.0
        %1386 = vmatpush1.msra.mxu0 0.0
        %1387 = vmatprep.subr.mxu0 0.0
        %1388 = vmatpush1.msra.mxu0 0.0
        %1389 = vmatprep.subr.mxu0 0.0
        %1390 = vmatpush1.msra.mxu0 0.0
        %1391 = vmatprep.subr.mxu0 0.0
        %1392 = vmatpush1.msra.mxu0 0.0
        %1393 = vmatprep.subr.mxu0 0.0
        %1394 = vmatpush1.msra.mxu0 0.0
        %1395 = vmatprep.subr.mxu0 0.0
        %1396 = vmatpush1.msra.mxu0 0.0
        %1397 = vmatprep.subr.mxu0 0.0
        %1398 = vmatpush1.msra.mxu0 0.0
        %1399 = vmatprep.subr.mxu0 0.0
        %1400 = vmatpush1.msra.mxu0 0.0
        %1401 = vmatprep.subr.mxu0 0.0
        %1402 = vmatpush1.msra.mxu0 0.0
        %1403 = vmatprep.subr.mxu0 0.0
        %1404 = vmatpush1.msra.mxu0 0.0
        %1405 = vmatprep.subr.mxu0 0.0
        %1406 = vmatpush1.msra.mxu0 0.0
        %1407 = vmatprep.subr.mxu0 0.0
        %1408 = vmatpush1.msra.mxu0 0.0
        %1409 = vmatprep.subr.mxu0 0.0
        %1410 = vmatpush1.msra.mxu0 0.0
        %1411 = vmatprep.subr.mxu0 0.0
        %1412 = vmatpush1.msra.mxu0 0.0
        %1413 = vmatprep.subr.mxu0 0.0
        %1414 = vmatpush1.msra.mxu0 0.0
        %1415 = vmatprep.subr.mxu0 0.0
        %1416 = vmatpush1.msra.mxu0 0.0
        %1417 = vmatprep.subr.mxu0 0.0
        %1418 = vmatpush1.msra.mxu0 0.0
        %1419 = vmatprep.subr.mxu0 0.0
        %1420 = vmatpush1.msra.mxu0 0.0
        %1421 = vmatprep.subr.mxu0 0.0
        %1422 = vmatpush1.msra.mxu0 0.0
        %1423 = vmatprep.subr.mxu0 0.0
        %1424 = vmatpush1.msra.mxu0 0.0
        %1425 = vmatprep.subr.mxu0 0.0
        %1426 = vmatpush1.msra.mxu0 0.0
        %1427 = vmatprep.subr.mxu0 0.0
        %1428 = vmatpush1.msra.mxu0 0.0
        %1429 = vmatprep.subr.mxu0 0.0
        %1430 = vmatpush1.msra.mxu0 0.0
        %1431 = vmatprep.subr.mxu0 0.0
        %1432 = vmatpush1.msra.mxu0 0.0
        %1433 = vmatprep.subr.mxu0 0.0
        %1434 = vmatpush1.msra.mxu0 0.0
        %1435 = vmatprep.subr.mxu0 0.0
        %1436 = vmatpush1.msra.mxu0 0.0
        %1437 = vmatprep.subr.mxu0 0.0
        %1438 = vmatpush1.msra.mxu0 0.0
        %1439 = vmatprep.mubr.f32.mxu0 0.0
        %1440 = vmatmul.mubr.f32.gmra.mrb[0].mxu0 %v1355
        %v1441 = vpop.f32.mrb[0].mxu0
        %v1442 = vadd.f32 %v1331, %v1441
        %v1443 = vpop.f32.mrb[0].mxu0
        %v1444 = vadd.f32 %v1331, %v1443
        %1445 = vmatprep.mubr.f32.mxu0 0.0
        %1446 = vmatmul.mubr.f32.gmra.mrb[0].mxu0 %v1358
        %v1447 = vpop.f32.mrb[0].mxu0
        %v1448 = vadd.f32 %v1336, %v1447
        %v1449 = vpop.f32.mrb[0].mxu0
        %v1450 = vadd.f32 %v1336, %v1449
        %1451 = vmatprep.mubr.f32.mxu0 0.0
        %1452 = vmatmul.mubr.f32.gmra.mrb[0].mxu0 %v1361
        %v1453 = vpop.f32.mrb[0].mxu0
        %v1454 = vadd.f32 %v1341, %v1453
        %v1455 = vpop.f32.mrb[0].mxu0
        %v1456 = vadd.f32 %v1341, %v1455
        %1457 = vmatprep.mubr.f32.mxu0 0.0
        %1458 = vmatmul.mubr.f32.gmra.mrb[0].mxu0 %v1364
        %v1459 = vpop.f32.mrb[0].mxu0
        %v1460 = vadd.f32 %v1346, %v1459
        %v1461 = vpop.f32.mrb[0].mxu0
        %v1462 = vadd.f32 %v1346, %v1461
        %1463 = vmatprep.mubr.f32.mxu0 0.0
        %1464 = vmatmul.mubr.f32.gmra.mrb[0].mxu0 %v1367
        %v1465 = vpop.f32.mrb[0].mxu0
        %v1466 = vadd.f32 %v1351, %v1465
        %v1467 = vpop.f32.mrb[0].mxu0
        %v1468 = vadd.f32 %v1351, %v1467
        %1469 = vdwg.mxu0
        %v1470 = vtanh.pop %v1442
        %v1471 = vtanh.pop %v1444
        %v1472 = vtanh.pop %v1448
        %v1473 = vtanh.pop %v1450
        %v1474 = vtanh.pop %v1454
        %v1475 = vtanh.pop %v1456
        %v1476 = vtanh.pop %v1460
        %v1477 = vtanh.pop %v1462
        %v1478 = vtanh.pop %v1466
        %v1479 = vtanh.pop %v1468
        %v1480 = vld [vmem:[%s10] sm:$0xff]
        %v1481 = vld [vmem:[%s10 + $0x8] sm:$0xff]
        %v1482 = vld [vmem:[%s10 + $0x10] sm:$0xff]
        %v1483 = vld [vmem:[%s11] sm:$0xff]
        %v1484 = vld [vmem:[%s11 + $0x8] sm:$0xff]
        %v1485 = vld [vmem:[%s11 + $0x10] sm:$0xff]
        %1487 = vset.pattern.permute.xlu0 0
        %1488 = vperm.xlu0 %1487, %v1483
        %v1489 = vpop.permute.xlu0 %1488
        %1492 = vset.pattern.permute.xlu0 0
        %1493 = vperm.xlu0 %1492, %v1484
        %v1494 = vpop.permute.xlu0 %1493
        %1497 = vset.pattern.permute.xlu0 0
        %1498 = vperm.xlu0 %1497, %v1485
        %v1499 = vpop.permute.xlu0 %1498
        %v1502 = vsel %vm1353, %v1480, 0
        %v1505 = vsel %vm1353, %v1481, 0
        %v1508 = vsel %vm1353, %v1482, 0
        %v1511 = vsel %vm704, %v1478, 0
        %v1514 = vsel %vm704, %v1479, 0
        %1516 = vmatprep.subr.mxu0 %v1471
        %1517 = vmatpush1.msra.mxu0 %v1470
        %1518 = vmatprep.subr.mxu0 %v1473
        %1519 = vmatpush1.msra.mxu0 %v1472
        %1520 = vmatprep.subr.mxu0 %v1475
        %1521 = vmatpush1.msra.mxu0 %v1474
        %1522 = vmatprep.subr.mxu0 %v1477
        %1523 = vmatpush1.msra.mxu0 %v1476
        %1524 = vmatprep.subr.mxu0 %v1514
        %1525 = vmatpush1.msra.mxu0 %v1511
        %1526 = vmatprep.subr.mxu0 0.0
        %1527 = vmatpush1.msra.mxu0 0.0
        %1528 = vmatprep.subr.mxu0 0.0
        %1529 = vmatpush1.msra.mxu0 0.0
        %1530 = vmatprep.subr.mxu0 0.0
        %1531 = vmatpush1.msra.mxu0 0.0
        %1532 = vmatprep.subr.mxu0 0.0
        %1533 = vmatpush1.msra.mxu0 0.0
        %1534 = vmatprep.subr.mxu0 0.0
        %1535 = vmatpush1.msra.mxu0 0.0
        %1536 = vmatprep.subr.mxu0 0.0
        %1537 = vmatpush1.msra.mxu0 0.0
        %1538 = vmatprep.subr.mxu0 0.0
        %1539 = vmatpush1.msra.mxu0 0.0
        %1540 = vmatprep.subr.mxu0 0.0
        %1541 = vmatpush1.msra.mxu0 0.0
        %1542 = vmatprep.subr.mxu0 0.0
        %1543 = vmatpush1.msra.mxu0 0.0
        %1544 = vmatprep.subr.mxu0 0.0
        %1545 = vmatpush1.msra.mxu0 0.0
        %1546 = vmatprep.subr.mxu0 0.0
        %1547 = vmatpush1.msra.mxu0 0.0
        %1548 = vmatprep.subr.mxu0 0.0
        %1549 = vmatpush1.msra.mxu0 0.0
        %1550 = vmatprep.subr.mxu0 0.0
        %1551 = vmatpush1.msra.mxu0 0.0
        %1552 = vmatprep.subr.mxu0 0.0
        %1553 = vmatpush1.msra.mxu0 0.0
        %1554 = vmatprep.subr.mxu0 0.0
        %1555 = vmatpush1.msra.mxu0 0.0
        %1556 = vmatprep.subr.mxu0 0.0
        %1557 = vmatpush1.msra.mxu0 0.0
        %1558 = vmatprep.subr.mxu0 0.0
        %1559 = vmatpush1.msra.mxu0 0.0
        %1560 = vmatprep.subr.mxu0 0.0
        %1561 = vmatpush1.msra.mxu0 0.0
        %1562 = vmatprep.subr.mxu0 0.0
        %1563 = vmatpush1.msra.mxu0 0.0
        %1564 = vmatprep.subr.mxu0 0.0
        %1565 = vmatpush1.msra.mxu0 0.0
        %1566 = vmatprep.subr.mxu0 0.0
        %1567 = vmatpush1.msra.mxu0 0.0
        %1568 = vmatprep.subr.mxu0 0.0
        %1569 = vmatpush1.msra.mxu0 0.0
        %1570 = vmatprep.subr.mxu0 0.0
        %1571 = vmatpush1.msra.mxu0 0.0
        %1572 = vmatprep.subr.mxu0 0.0
        %1573 = vmatpush1.msra.mxu0 0.0
        %1574 = vmatprep.subr.mxu0 0.0
        %1575 = vmatpush1.msra.mxu0 0.0
        %1576 = vmatprep.subr.mxu0 0.0
        %1577 = vmatpush1.msra.mxu0 0.0
        %1578 = vmatprep.subr.mxu0 0.0
        %1579 = vmatpush1.msra.mxu0 0.0
        %1580 = vmatprep.mubr.f32.mxu0 0.0
        %1581 = vmatmul.mubr.f32.gmra.mrb[0].mxu0 %v1502
        %v1582 = vpop.f32.mrb[0].mxu0
        %v1583 = vadd.f32 %v1489, %v1582
        %v1584 = vpop.f32.mrb[0].mxu0
        %v1585 = vadd.f32 %v1489, %v1584
        %1586 = vmatprep.mubr.f32.mxu0 0.0
        %1587 = vmatmul.mubr.f32.gmra.mrb[0].mxu0 %v1505
        %v1588 = vpop.f32.mrb[0].mxu0
        %v1589 = vadd.f32 %v1494, %v1588
        %v1590 = vpop.f32.mrb[0].mxu0
        %v1591 = vadd.f32 %v1494, %v1590
        %1592 = vmatprep.mubr.f32.mxu0 0.0
        %1593 = vmatmul.mubr.f32.gmra.mrb[0].mxu0 %v1508
        %v1594 = vpop.f32.mrb[0].mxu0
        %v1595 = vadd.f32 %v1499, %v1594
        %v1596 = vpop.f32.mrb[0].mxu0
        %v1597 = vadd.f32 %v1499, %v1596
        %1598 = vdwg.mxu0
        %v1599 = vtanh.pop %v1583
        %v1600 = vtanh.pop %v1585
        %v1601 = vtanh.pop %v1589
        %v1602 = vtanh.pop %v1591
        %v1603 = vtanh.pop %v1595
        %v1604 = vtanh.pop %v1597
        %v1605 = vld [vmem:[%s12] sm:$0xff]
        %v1606 = vld [vmem:[%s12 + $0x8] sm:$0xff]
        %v1607 = vld [vmem:[%s12 + $0x10] sm:$0xff]
        %v1608 = vld [vmem:[%s13] sm:$0xff]
        %v1609 = vld [vmem:[%s13 + $0x8] sm:$0xff]
        %v1610 = vld [vmem:[%s13 + $0x10] sm:$0xff]
        %1612 = vset.pattern.permute.xlu0 0
        %1613 = vperm.xlu0 %1612, %v1608
        %v1614 = vpop.permute.xlu0 %1613
        %1617 = vset.pattern.permute.xlu0 0
        %1618 = vperm.xlu0 %1617, %v1609
        %v1619 = vpop.permute.xlu0 %1618
        %1622 = vset.pattern.permute.xlu0 0
        %1623 = vperm.xlu0 %1622, %v1610
        %v1624 = vpop.permute.xlu0 %1623
        %v1627 = vsel %vm619, %v1605, 0
        %v1630 = vsel %vm619, %v1606, 0
        %v1633 = vsel %vm619, %v1607, 0
        %1635 = vmatprep.subr.mxu0 %v1600
        %1636 = vmatpush1.msra.mxu0 %v1599
        %1637 = vmatprep.subr.mxu0 %v1602
        %1638 = vmatpush1.msra.mxu0 %v1601
        %1639 = vmatprep.subr.mxu0 %v1604
        %1640 = vmatpush1.msra.mxu0 %v1603
        %1641 = vmatprep.subr.mxu0 0.0
        %1642 = vmatpush1.msra.mxu0 0.0
        %1643 = vmatprep.subr.mxu0 0.0
        %1644 = vmatpush1.msra.mxu0 0.0
        %1645 = vmatprep.subr.mxu0 0.0
        %1646 = vmatpush1.msra.mxu0 0.0
        %1647 = vmatprep.subr.mxu0 0.0
        %1648 = vmatpush1.msra.mxu0 0.0
        %1649 = vmatprep.subr.mxu0 0.0
        %1650 = vmatpush1.msra.mxu0 0.0
        %1651 = vmatprep.subr.mxu0 0.0
        %1652 = vmatpush1.msra.mxu0 0.0
        %1653 = vmatprep.subr.mxu0 0.0
        %1654 = vmatpush1.msra.mxu0 0.0
        %1655 = vmatprep.subr.mxu0 0.0
        %1656 = vmatpush1.msra.mxu0 0.0
        %1657 = vmatprep.subr.mxu0 0.0
        %1658 = vmatpush1.msra.mxu0 0.0
        %1659 = vmatprep.subr.mxu0 0.0
        %1660 = vmatpush1.msra.mxu0 0.0
        %1661 = vmatprep.subr.mxu0 0.0
        %1662 = vmatpush1.msra.mxu0 0.0
        %1663 = vmatprep.subr.mxu0 0.0
        %1664 = vmatpush1.msra.mxu0 0.0
        %1665 = vmatprep.subr.mxu0 0.0
        %1666 = vmatpush1.msra.mxu0 0.0
        %1667 = vmatprep.subr.mxu0 0.0
        %1668 = vmatpush1.msra.mxu0 0.0
        %1669 = vmatprep.subr.mxu0 0.0
        %1670 = vmatpush1.msra.mxu0 0.0
        %1671 = vmatprep.subr.mxu0 0.0
        %1672 = vmatpush1.msra.mxu0 0.0
        %1673 = vmatprep.subr.mxu0 0.0
        %1674 = vmatpush1.msra.mxu0 0.0
        %1675 = vmatprep.subr.mxu0 0.0
        %1676 = vmatpush1.msra.mxu0 0.0
        %1677 = vmatprep.subr.mxu0 0.0
        %1678 = vmatpush1.msra.mxu0 0.0
        %1679 = vmatprep.subr.mxu0 0.0
        %1680 = vmatpush1.msra.mxu0 0.0
        %1681 = vmatprep.subr.mxu0 0.0
        %1682 = vmatpush1.msra.mxu0 0.0
        %1683 = vmatprep.subr.mxu0 0.0
        %1684 = vmatpush1.msra.mxu0 0.0
        %1685 = vmatprep.subr.mxu0 0.0
        %1686 = vmatpush1.msra.mxu0 0.0
        %1687 = vmatprep.subr.mxu0 0.0
        %1688 = vmatpush1.msra.mxu0 0.0
        %1689 = vmatprep.subr.mxu0 0.0
        %1690 = vmatpush1.msra.mxu0 0.0
        %1691 = vmatprep.subr.mxu0 0.0
        %1692 = vmatpush1.msra.mxu0 0.0
        %1693 = vmatprep.subr.mxu0 0.0
        %1694 = vmatpush1.msra.mxu0 0.0
        %1695 = vmatprep.subr.mxu0 0.0
        %1696 = vmatpush1.msra.mxu0 0.0
        %1697 = vmatprep.subr.mxu0 0.0
        %1698 = vmatpush1.msra.mxu0 0.0
        %1699 = vmatprep.mubr.f32.mxu0 0.0
        %1700 = vmatmul.mubr.f32.gmra.mrb[0].mxu0 %v1627
        %v1701 = vpop.f32.mrb[0].mxu0
        %v1702 = vadd.f32 %v1614, %v1701
        %v1703 = vpop.f32.mrb[0].mxu0
        %v1704 = vadd.f32 %v1614, %v1703
        %1705 = vmatprep.mubr.f32.mxu0 0.0
        %1706 = vmatmul.mubr.f32.gmra.mrb[0].mxu0 %v1630
        %v1707 = vpop.f32.mrb[0].mxu0
        %v1708 = vadd.f32 %v1619, %v1707
        %v1709 = vpop.f32.mrb[0].mxu0
        %v1710 = vadd.f32 %v1619, %v1709
        %1711 = vmatprep.mubr.f32.mxu0 0.0
        %1712 = vmatmul.mubr.f32.gmra.mrb[0].mxu0 %v1633
        %v1713 = vpop.f32.mrb[0].mxu0
        %v1714 = vadd.f32 %v1624, %v1713
        %v1715 = vpop.f32.mrb[0].mxu0
        %v1716 = vadd.f32 %v1624, %v1715
        %1717 = vdwg.mxu0
        %v1718 = vtanh.pop %v1702
        %v1719 = vtanh.pop %v1704
        %v1720 = vtanh.pop %v1708
        %v1721 = vtanh.pop %v1710
        %v1722 = vtanh.pop %v1714
        %v1723 = vtanh.pop %v1716
        %v1724 = vld [vmem:[%s14] sm:$0xff]
        %v1725 = vld [vmem:[%s14 + $0x8] sm:$0xf]
        %v1726 = vld [vmem:[%s15] sm:$0xff]
        %v1727 = vld [vmem:[%s15 + $0x8] sm:$0xf]
        %1729 = vset.pattern.permute.xlu0 0
        %1730 = vperm.xlu0 %1729, %v1726
        %v1731 = vpop.permute.xlu0 %1730
        %1734 = vset.pattern.permute.xlu0 0
        %1735 = vperm.xlu0 %1734, %v1727
        %v1736 = vpop.permute.xlu0 %1735
        %v1739 = vsel %vm619, %v1724, 0
        %v1742 = vsel %vm619, %v1725, 0
        %1744 = vmatprep.subr.mxu0 %v1719
        %1745 = vmatpush1.msra.mxu0 %v1718
        %1746 = vmatprep.subr.mxu0 %v1721
        %1747 = vmatpush1.msra.mxu0 %v1720
        %1748 = vmatprep.subr.mxu0 %v1723
        %1749 = vmatpush1.msra.mxu0 %v1722
        %1750 = vmatprep.subr.mxu0 0.0
        %1751 = vmatpush1.msra.mxu0 0.0
        %1752 = vmatprep.subr.mxu0 0.0
        %1753 = vmatpush1.msra.mxu0 0.0
        %1754 = vmatprep.subr.mxu0 0.0
        %1755 = vmatpush1.msra.mxu0 0.0
        %1756 = vmatprep.subr.mxu0 0.0
        %1757 = vmatpush1.msra.mxu0 0.0
        %1758 = vmatprep.subr.mxu0 0.0
        %1759 = vmatpush1.msra.mxu0 0.0
        %1760 = vmatprep.subr.mxu0 0.0
        %1761 = vmatpush1.msra.mxu0 0.0
        %1762 = vmatprep.subr.mxu0 0.0
        %1763 = vmatpush1.msra.mxu0 0.0
        %1764 = vmatprep.subr.mxu0 0.0
        %1765 = vmatpush1.msra.mxu0 0.0
        %1766 = vmatprep.subr.mxu0 0.0
        %1767 = vmatpush1.msra.mxu0 0.0
        %1768 = vmatprep.subr.mxu0 0.0
        %1769 = vmatpush1.msra.mxu0 0.0
        %1770 = vmatprep.subr.mxu0 0.0
        %1771 = vmatpush1.msra.mxu0 0.0
        %1772 = vmatprep.subr.mxu0 0.0
        %1773 = vmatpush1.msra.mxu0 0.0
        %1774 = vmatprep.subr.mxu0 0.0
        %1775 = vmatpush1.msra.mxu0 0.0
        %1776 = vmatprep.subr.mxu0 0.0
        %1777 = vmatpush1.msra.mxu0 0.0
        %1778 = vmatprep.subr.mxu0 0.0
        %1779 = vmatpush1.msra.mxu0 0.0
        %1780 = vmatprep.subr.mxu0 0.0
        %1781 = vmatpush1.msra.mxu0 0.0
        %1782 = vmatprep.subr.mxu0 0.0
        %1783 = vmatpush1.msra.mxu0 0.0
        %1784 = vmatprep.subr.mxu0 0.0
        %1785 = vmatpush1.msra.mxu0 0.0
        %1786 = vmatprep.subr.mxu0 0.0
        %1787 = vmatpush1.msra.mxu0 0.0
        %1788 = vmatprep.subr.mxu0 0.0
        %1789 = vmatpush1.msra.mxu0 0.0
        %1790 = vmatprep.subr.mxu0 0.0
        %1791 = vmatpush1.msra.mxu0 0.0
        %1792 = vmatprep.subr.mxu0 0.0
        %1793 = vmatpush1.msra.mxu0 0.0
        %1794 = vmatprep.subr.mxu0 0.0
        %1795 = vmatpush1.msra.mxu0 0.0
        %1796 = vmatprep.subr.mxu0 0.0
        %1797 = vmatpush1.msra.mxu0 0.0
        %1798 = vmatprep.subr.mxu0 0.0
        %1799 = vmatpush1.msra.mxu0 0.0
        %1800 = vmatprep.subr.mxu0 0.0
        %1801 = vmatpush1.msra.mxu0 0.0
        %1802 = vmatprep.subr.mxu0 0.0
        %1803 = vmatpush1.msra.mxu0 0.0
        %1804 = vmatprep.subr.mxu0 0.0
        %1805 = vmatpush1.msra.mxu0 0.0
        %1806 = vmatprep.subr.mxu0 0.0
        %1807 = vmatpush1.msra.mxu0 0.0
        %1808 = vmatprep.mubr.f32.mxu0 0.0
        %1809 = vmatmul.mubr.f32.gmra.mrb[0].mxu0 %v1739
        %v1810 = vpop.f32.mrb[0].mxu0
        %v1811 = vadd.f32 %v1731, %v1810
        %v1812 = vpop.f32.mrb[0].mxu0
        %v1813 = vadd.f32 %v1731, %v1812
        %1814 = vmatprep.mubr.f32.mxu0 0.0
        %1815 = vmatmul.mubr.f32.gmra.mrb[0].mxu0 %v1742
        %v1816 = vpop.f32.mrb[0].mxu0
        %v1817 = vadd.f32 %v1736, %v1816
        %v1818 = vpop.f32.mrb[0].mxu0
        %v1819 = vadd.f32 %v1736, %v1818
        %1820 = vdwg.mxu0
        %v1821 = vtanh.pop %v1811
        %v1822 = vtanh.pop %v1813
        %v1823 = vtanh.pop %v1817
        %v1824 = vtanh.pop %v1819
        %v1825 = vld [vmem:[%s16] sm:$0xf]
        %v1826 = vld [vmem:[%s17] sm:$0xf]
        %1828 = vset.pattern.permute.xlu0 0
        %1829 = vperm.xlu0 %1828, %v1826
        %v1830 = vpop.permute.xlu0 %1829
        %vm1832 = vcmask 97280
        %v1834 = vsel %vm1832, %v1825, 0
        %v1837 = vsel %vm704, %v1823, 0
        %v1840 = vsel %vm704, %v1824, 0
        %1842 = vmatprep.subr.mxu0 %v1822
        %1843 = vmatpush1.msra.mxu0 %v1821
        %1844 = vmatprep.subr.mxu0 %v1840
        %1845 = vmatpush1.msra.mxu0 %v1837
        %1846 = vmatprep.subr.mxu0 0.0
        %1847 = vmatpush1.msra.mxu0 0.0
        %1848 = vmatprep.subr.mxu0 0.0
        %1849 = vmatpush1.msra.mxu0 0.0
        %1850 = vmatprep.subr.mxu0 0.0
        %1851 = vmatpush1.msra.mxu0 0.0
        %1852 = vmatprep.subr.mxu0 0.0
        %1853 = vmatpush1.msra.mxu0 0.0
        %1854 = vmatprep.subr.mxu0 0.0
        %1855 = vmatpush1.msra.mxu0 0.0
        %1856 = vmatprep.subr.mxu0 0.0
        %1857 = vmatpush1.msra.mxu0 0.0
        %1858 = vmatprep.subr.mxu0 0.0
        %1859 = vmatpush1.msra.mxu0 0.0
        %1860 = vmatprep.subr.mxu0 0.0
        %1861 = vmatpush1.msra.mxu0 0.0
        %1862 = vmatprep.subr.mxu0 0.0
        %1863 = vmatpush1.msra.mxu0 0.0
        %1864 = vmatprep.subr.mxu0 0.0
        %1865 = vmatpush1.msra.mxu0 0.0
        %1866 = vmatprep.subr.mxu0 0.0
        %1867 = vmatpush1.msra.mxu0 0.0
        %1868 = vmatprep.subr.mxu0 0.0
        %1869 = vmatpush1.msra.mxu0 0.0
        %1870 = vmatprep.subr.mxu0 0.0
        %1871 = vmatpush1.msra.mxu0 0.0
        %1872 = vmatprep.subr.mxu0 0.0
        %1873 = vmatpush1.msra.mxu0 0.0
        %1874 = vmatprep.subr.mxu0 0.0
        %1875 = vmatpush1.msra.mxu0 0.0
        %1876 = vmatprep.subr.mxu0 0.0
        %1877 = vmatpush1.msra.mxu0 0.0
        %1878 = vmatprep.subr.mxu0 0.0
        %1879 = vmatpush1.msra.mxu0 0.0
        %1880 = vmatprep.subr.mxu0 0.0
        %1881 = vmatpush1.msra.mxu0 0.0
        %1882 = vmatprep.subr.mxu0 0.0
        %1883 = vmatpush1.msra.mxu0 0.0
        %1884 = vmatprep.subr.mxu0 0.0
        %1885 = vmatpush1.msra.mxu0 0.0
        %1886 = vmatprep.subr.mxu0 0.0
        %1887 = vmatpush1.msra.mxu0 0.0
        %1888 = vmatprep.subr.mxu0 0.0
        %1889 = vmatpush1.msra.mxu0 0.0
        %1890 = vmatprep.subr.mxu0 0.0
        %1891 = vmatpush1.msra.mxu0 0.0
        %1892 = vmatprep.subr.mxu0 0.0
        %1893 = vmatpush1.msra.mxu0 0.0
        %1894 = vmatprep.subr.mxu0 0.0
        %1895 = vmatpush1.msra.mxu0 0.0
        %1896 = vmatprep.subr.mxu0 0.0
        %1897 = vmatpush1.msra.mxu0 0.0
        %1898 = vmatprep.subr.mxu0 0.0
        %1899 = vmatpush1.msra.mxu0 0.0
        %1900 = vmatprep.subr.mxu0 0.0
        %1901 = vmatpush1.msra.mxu0 0.0
        %1902 = vmatprep.subr.mxu0 0.0
        %1903 = vmatpush1.msra.mxu0 0.0
        %1904 = vmatprep.subr.mxu0 0.0
        %1905 = vmatpush1.msra.mxu0 0.0
        %1906 = vmatprep.mubr.f32.mxu0 0.0
        %1907 = vmatmul.mubr.f32.gmra.mrb[0].mxu0 %v1834
        %v1908 = vpop.f32.mrb[0].mxu0
        %v1909 = vadd.f32 %v1830, %v1908
        %v1910 = vpop.f32.mrb[0].mxu0
        %v1911 = vadd.f32 %v1830, %v1910
        %1912 = vdwg.mxu0
        %v1915 = vcombine.low %v1909, %v1911
        %1917 = vst [vmem:[%s603] sm:$0xff] %v1915
        %s1918 = sand.u32 %s423, 1
        %s1919 = scalar_lea.sflag [#allocation4], %s1918
        %s1920 = sand.u32 %s423, 1
        %s1921 = smul.addr %s1920, 8
        %s1922 = scalar_lea.vmem [#allocation3], %s1921
        // Predicated region
        $region116: #{tpu_custom_call.1} parent=110 // pred_check
          %p1923 = pneg %p433
        $region117: #{tpu_custom_call.1} parent=110 // pred_check_branch
          %1925 = sbr.rel (%p1923) target = $region119
        $region118: #{tpu_custom_call.1} parent=110 // pred_region
          %s1926 = smul.u32 2, %s32
          %s1928 = ssub.s32 128, 128
          %1929 = vsyncadd %s1919, %s1928
          %s1930 = smul.addr %s1926, 64
          %s1931 = scalar_lea.hbm %s18, %s1930
          %s1933 = sshll.u32 %s1922, 4
          %s1934 = int_to_ptr.vmem [resolvable:$true] %s1933
          %1936 = dma.vmem_to_hbm [thread:$0]  %s1934, 128, %s1931, %s1919
        $region119: #{tpu_custom_call.1} parent=110 // pred_fallthru
          _
      $region111: #{tpu_custom_call.1} parent=5 // pred_fallthru
        _
      %p1937 = scmp.le.s32.totalorder 2, %s27
      // Predicated region
      $region120: #{tpu_custom_call.1} parent=5 // pred_check
        %p1938 = pneg %p1937
      $region121: #{tpu_custom_call.1} parent=5 // pred_check_branch
        %1940 = sbr.rel (%p1938) target = $region123
      $region122: #{tpu_custom_call.1} parent=5 // pred_region
        %s1941 = ssub.s32 %s27, 2
        // Predicated region
        $region124: #{tpu_custom_call.1} parent=122 // pred_check
          %p1942 = pneg %p439
        $region125: #{tpu_custom_call.1} parent=122 // pred_check_branch
          %1944 = sbr.rel (%p1942) target = $region127
        $region126: #{tpu_custom_call.1} parent=122 // pred_region
          %s1945 = sand.u32 %s424, 1
          %s1946 = scalar_lea.sflag [#allocation4], %s1945
          %s1947 = sand.u32 %s424, 1
          %s1948 = smul.addr %s1947, 8
          %s1949 = scalar_lea.vmem [#allocation3], %s1948
          %1950 = dma.done %s1946, 128
        $region127: #{tpu_custom_call.1} parent=122 // pred_fallthru
          _
      $region123: #{tpu_custom_call.1} parent=5 // pred_fallthru
        _
    $region6: #{tpu_custom_call.1} parent=1 // loop_footer
      %s31 = sadd.s32 1, %s27
    $region7: #{tpu_custom_call.1} parent=1 // loop_footer_branch
      %26 = sbr.rel target = $region3
    $region8: #{tpu_custom_call.1} parent=1 // loop_exit
      _
    %1951 = vsyncpa [#allocation4], 1
    %s1952 = scalar_lea.sflag [#allocation4], 1
    %1953 = vsyncpa %s1952, 1

</llo_original>
